<compile_context>
chip_gen: v7x
topology: tpu7x:2x2x1
jax: 0.10.0
libtpu: 0.0.40
codegen_flags: <defaults>
</compile_context>

<pallas_src>
import jax
import jax.numpy as jnp
from jax.experimental import pallas as pl
from jax.experimental.pallas import tpu as pltpu


# ----------------------------- kernels ---------------------------------------


def _gate_and_mix(x_in_lo, x_out_lo, x_in_f32, x_out_f32, wc_ref, b_ref):
    # One K=2F MXU contraction: [x_in | x_out] @ [W_ci ; W_co], f32 accumulation.
    x_cat = jnp.concatenate([x_in_lo, x_out_lo], axis=-1)
    pre = jnp.dot(x_cat, wc_ref[...], preferred_element_type=jnp.float32) + b_ref[...]
    z = jax.nn.sigmoid(pre)                       # f32
    return z * x_out_f32 + (1.0 - z) * x_in_f32   # f32 mix


def gated_skip_kernel_proj(in_ref, outx_ref, wlin_ref, wc_ref, b_ref, o_ref):
    # in_features != out_features: project the skip branch first (bias-free Linear).
    x_in_f32 = jnp.dot(in_ref[...], wlin_ref[...], preferred_element_type=jnp.float32)
    x_in_lo = x_in_f32.astype(wc_ref.dtype)
    x_out_lo = outx_ref[...]
    o_ref[...] = _gate_and_mix(
        x_in_lo, x_out_lo, x_in_f32, x_out_lo.astype(jnp.float32), wc_ref, b_ref
    ).astype(o_ref.dtype)


def gated_skip_kernel_noproj(in_ref, outx_ref, wc_ref, b_ref, o_ref):
    # in_features == out_features: skip branch used directly.
    x_in_lo = in_ref[...]
    x_out_lo = outx_ref[...]
    o_ref[...] = _gate_and_mix(
        x_in_lo, x_out_lo, x_in_lo.astype(jnp.float32),
        x_out_lo.astype(jnp.float32), wc_ref, b_ref
    ).astype(o_ref.dtype)


# ----------------------------- tiling policy ----------------------------------


def _round_up(x, m):
    return ((x + m - 1) // m) * m


def _pick_row_tile(n, f_in, f_out, act_itemsize, out_itemsize,
                   max_tile=512, num_cores=2,
                   vmem_budget_bytes=24 * 1024 * 1024):
    """VMEM- and core-aware row tile.

    Weights/bias are resident (single-buffered); the in/out activation tiles and the
    output tile are double-buffered by the Pallas pipeline.  The budget stays under
    the 32 MiB default scoped VMEM limit (and v7x's 64 MiB physical VMEM).
    """
    weight_bytes = (f_in * f_out + 2 * f_out * f_out) * act_itemsize + f_out * 4
    act_budget = max(vmem_budget_bytes - weight_bytes, 1 << 20)
    per_row = 2 * (f_in + f_out) * act_itemsize + 2 * f_out * out_itemsize
    tm = max(8, min(max_tile, act_budget // per_row) // 8 * 8)
    tm = min(tm, _round_up(n, 8))
    # Give the "parallel" row axis >= num_cores steps so v7x can use both TensorCores.
    if n > 8 and pl.cdiv(n, tm) < num_cores:
        tm = max(8, _round_up(pl.cdiv(n, num_cores), 8))
    return tm


# ----------------------------- wrapper ----------------------------------------


def pack_params(params, compute_dtype=jnp.bfloat16):
    """One-time packing (outside the forward path).

    Returns (w_lin_or_None, wc, b):
      wc = concat([w_ci, w_co], axis=0) in compute_dtype   -> [2*F_out, F_out]
      b  = (b_ci + b_co) as f32                            -> [1, F_out]
    """
    w_lin, w_ci, b_ci, w_co, b_co = params
    wc = jnp.concatenate([w_ci, w_co], axis=0).astype(compute_dtype)
    b = (b_ci + b_co).reshape(1, -1).astype(jnp.float32)
    w_lin_p = None if w_lin is None else w_lin.astype(compute_dtype)
    return (w_lin_p, wc, b)


def gated_skip_connection(in_x, out_x, packed_params, *, compute_dtype=jnp.bfloat16):
    """packed_params = pack_params(raw_params); weights stored as [in, out]."""
    w_lin, wc, b = packed_params
    n, f_in = in_x.shape
    f_out = out_x.shape[1]
    out_dtype = jnp.promote_types(in_x.dtype, out_x.dtype)

    if f_in != f_out:
        assert w_lin is not None, "in_features != out_features requires the projection weight"

    # Stream activations at compute_dtype (bf16); all math stays f32 in-kernel.
    in_lo = in_x.astype(compute_dtype)
    out_lo = out_x.astype(compute_dtype)

    act_isz = jnp.dtype(compute_dtype).itemsize
    out_isz = jnp.dtype(out_dtype).itemsize
    tm = _pick_row_tile(n, f_in, f_out, act_isz, out_isz)
    grid = (pl.cdiv(n, tm),)

    row_spec_in = pl.BlockSpec((tm, f_in), lambda i: (i, 0))
    row_spec_out = pl.BlockSpec((tm, f_out), lambda i: (i, 0))
    compiler_params = pltpu.CompilerParams(dimension_semantics=("parallel",))

    def run(resident_weights):
        def const_spec(shape):
            idx = lambda i, _nd=len(shape): (0,) * _nd
            if resident_weights:
                # Constant index_map -> one VMEM buffer is enough (halves weight VMEM).
                return pl.BlockSpec(shape, idx, pipeline_mode=pl.Buffered(1))
            return pl.BlockSpec(shape, idx)

        wc_spec = const_spec((2 * f_out, f_out))
        b_spec = const_spec((1, f_out))

        if w_lin is not None:
            wlin_spec = const_spec((f_in, f_out))
            return pl.pallas_call(
                gated_skip_kernel_proj,
                out_shape=jax.ShapeDtypeStruct((n, f_out), out_dtype),
                grid_spec=pl.GridSpec(
                    grid=grid,
                    in_specs=[row_spec_in, row_spec_out, wlin_spec, wc_spec, b_spec],
                    out_specs=row_spec_out,
                ),
                compiler_params=compiler_params,
            )(in_lo, out_lo, w_lin, wc, b)
        return pl.pallas_call(
            gated_skip_kernel_noproj,
            out_shape=jax.ShapeDtypeStruct((n, f_out), out_dtype),
            grid_spec=pl.GridSpec(
                grid=grid,
                in_specs=[row_spec_out, row_spec_out, wc_spec, b_spec],
                out_specs=row_spec_out,
            ),
            compiler_params=compiler_params,
        )(in_lo, out_lo, wc, b)

    try:
        return run(resident_weights=True)
    except Exception:
        # Fallback if this JAX build rejects pipeline_mode=pl.Buffered(1).
        return run(resident_weights=False)


# ----------------------------- init & reference -------------------------------


def init_params(key, in_features, out_features):
    """PyTorch nn.Linear-style uniform init; weights stored [in, out] for x @ W."""
    ks = jax.random.split(key, 5)
    if in_features != out_features:
        s = 1.0 / jnp.sqrt(float(in_features))
        w_lin = jax.random.uniform(ks[0], (in_features, out_features), jnp.float32, -s, s)
    else:
        w_lin = None
    s = 1.0 / jnp.sqrt(float(out_features))
    w_ci = jax.random.uniform(ks[1], (out_features, out_features), jnp.float32, -s, s)
    b_ci = jax.random.uniform(ks[2], (out_features,), jnp.float32, -s, s)
    w_co = jax.random.uniform(ks[3], (out_features, out_features), jnp.float32, -s, s)
    b_co = jax.random.uniform(ks[4], (out_features,), jnp.float32, -s, s)
    return (w_lin, w_ci, b_ci, w_co, b_co)


def reference(in_x, out_x, params, compute_dtype=jnp.bfloat16):
    """Pure-JAX reference with the same bf16-stream / f32-accumulate numerics."""
    w_lin, w_ci, b_ci, w_co, b_co = params
    cd = compute_dtype
    if w_lin is None:
        x_lo = in_x.astype(cd)
        x_f32 = x_lo.astype(jnp.float32)
    else:
        x_f32 = jnp.dot(in_x.astype(cd), w_lin.astype(cd),
                        preferred_element_type=jnp.float32)
        x_lo = x_f32.astype(cd)
    xo_lo = out_x.astype(cd)
    pre = (jnp.dot(x_lo, w_ci.astype(cd), preferred_element_type=jnp.float32)
           + jnp.dot(xo_lo, w_co.astype(cd), preferred_element_type=jnp.float32)
           + (b_ci + b_co))
    z = jax.nn.sigmoid(pre)
    out = z * xo_lo.astype(jnp.float32) + (1.0 - z) * x_f32
    return out.astype(jnp.promote_types(in_x.dtype, out_x.dtype))


# ----------------------------- demo / test ------------------------------------


if __name__ == "__main__":
    key = jax.random.PRNGKey(0)
    kp1, kp2, kin, kout, kin2, kout2 = jax.random.split(key, 6)

    # Case 1: in_features != out_features -> projection branch of the module.
    N, F_IN, F_OUT = 64, 64, 128
    raw1 = init_params(kp1, F_IN, F_OUT)
    packed1 = pack_params(raw1)               # packed ONCE, outside the forward path
    in_x = jax.random.normal(kin, (N, F_IN), jnp.float32)
    out_x = jax.random.normal(kout, (N, F_OUT), jnp.float32)

    y = gated_skip_connection(in_x, out_x, packed1)
    jax.block_until_ready(y)
    ref = reference(in_x, out_x, raw1)
    assert y.shape == (N, F_OUT) and y.dtype == jnp.float32
    assert jnp.allclose(y, ref, atol=2e-3, rtol=2e-3), float(jnp.max(jnp.abs(y - ref)))

    # Case 2: in_features == out_features -> identity skip branch.
    raw2 = init_params(kp2, F_OUT, F_OUT)
    packed2 = pack_params(raw2)
    in_x2 = jax.random.normal(kin2, (N, F_OUT), jnp.float32)
    out_x2 = jax.random.normal(kout2, (N, F_OUT), jnp.float32)

    y2 = gated_skip_connection(in_x2, out_x2, packed2)
    jax.block_until_ready(y2)
    ref2 = reference(in_x2, out_x2, raw2)
    assert y2.shape == (N, F_OUT)
    assert jnp.allclose(y2, ref2, atol=2e-3, rtol=2e-3), float(jnp.max(jnp.abs(y2 - ref2)))

    print("KERNEL_OK")
</pallas_src>

<mosaic_0001>
module attributes {stable_mosaic.version = 11 : i64} {
  func.func @gated_skip_kernel_proj(%arg0: i32, %arg1: memref<32x64xbf16, #tpu.memory_space<vmem>>, %arg2: memref<32x128xbf16, #tpu.memory_space<vmem>>, %arg3: memref<64x128xbf16, #tpu.memory_space<vmem>>, %arg4: memref<256x128xbf16, #tpu.memory_space<vmem>>, %arg5: memref<1x128xf32, #tpu.memory_space<vmem>>, %arg6: memref<32x128xf32, #tpu.memory_space<vmem>>) attributes {dimension_semantics = [#tpu.dimension_semantics<parallel>], iteration_bounds = array<i64: 2>, scalar_prefetch = 0 : i64, scratch_operands = 0 : i64, tpu.core_type = #tpu.core_type<tc>, window_params = [{transform_indices = @transform_0, window_bounds = array<i64: 32, 64>}, {transform_indices = @transform_1, window_bounds = array<i64: 32, 128>}, {pipeline_mode = #tpu.pipeline_mode<synchronous>, transform_indices = @transform_2, window_bounds = array<i64: 64, 128>}, {pipeline_mode = #tpu.pipeline_mode<synchronous>, transform_indices = @transform_3, window_bounds = array<i64: 256, 128>}, {pipeline_mode = #tpu.pipeline_mode<synchronous>, transform_indices = @transform_4, window_bounds = array<i64: 1, 128>}, {transform_indices = @transform_5, window_bounds = array<i64: 32, 128>}]} {
    %c0 = arith.constant 0 : index
    %c0_0 = arith.constant 0 : index
    %0 = vector.load %arg1[%c0, %c0_0] : memref<32x64xbf16, #tpu.memory_space<vmem>>, vector<32x64xbf16>
    %c0_1 = arith.constant 0 : index
    %c0_2 = arith.constant 0 : index
    %1 = vector.load %arg3[%c0_1, %c0_2] : memref<64x128xbf16, #tpu.memory_space<vmem>>, vector<64x128xbf16>
    %cst = arith.constant dense<0.000000e+00> : vector<32x128xf32>
    %2 = tpu.matmul %0, %1, %cst {dimension_numbers = #tpu.dot_dimension_numbers<[1], [0], [0], [1], [0, 0, 1, 1], [], []>} : vector<32x64xbf16>, vector<64x128xbf16>, vector<32x128xf32> -> vector<32x128xf32>
    %3 = arith.truncf %2 : vector<32x128xf32> to vector<32x128xbf16>
    %c0_3 = arith.constant 0 : index
    %c0_4 = arith.constant 0 : index
    %4 = vector.load %arg2[%c0_3, %c0_4] : memref<32x128xbf16, #tpu.memory_space<vmem>>, vector<32x128xbf16>
    %5 = arith.extf %4 : vector<32x128xbf16> to vector<32x128xf32>
    %6 = tpu.concatenate %3, %4 in 1 : vector<32x128xbf16>, vector<32x128xbf16> -> vector<32x256xbf16>
    %c0_5 = arith.constant 0 : index
    %c0_6 = arith.constant 0 : index
    %7 = vector.load %arg4[%c0_5, %c0_6] : memref<256x128xbf16, #tpu.memory_space<vmem>>, vector<256x128xbf16>
    %cst_7 = arith.constant dense<0.000000e+00> : vector<32x128xf32>
    %8 = tpu.matmul %6, %7, %cst_7 {dimension_numbers = #tpu.dot_dimension_numbers<[1], [0], [0], [1], [0, 0, 1, 1], [], []>} : vector<32x256xbf16>, vector<256x128xbf16>, vector<32x128xf32> -> vector<32x128xf32>
    %c0_8 = arith.constant 0 : index
    %c0_9 = arith.constant 0 : index
    %9 = vector.load %arg5[%c0_8, %c0_9] : memref<1x128xf32, #tpu.memory_space<vmem>>, vector<1x128xf32>
    %10 = vector.broadcast %9 : vector<1x128xf32> to vector<32x128xf32>
    %11 = arith.addf %8, %10 : vector<32x128xf32>
    %12 = arith.negf %11 : vector<32x128xf32>
    %13 = math.exp %12 : vector<32x128xf32>
    %cst_10 = arith.constant 1.000000e+00 : f32
    %14 = vector.broadcast %cst_10 : f32 to vector<32x128xf32>
    %15 = arith.addf %14, %13 : vector<32x128xf32>
    %16 = arith.divf %14, %15 : vector<32x128xf32>
    %17 = arith.mulf %16, %5 : vector<32x128xf32>
    %cst_11 = arith.constant 1.000000e+00 : f32
    %18 = vector.broadcast %cst_11 : f32 to vector<32x128xf32>
    %19 = arith.subf %18, %16 : vector<32x128xf32>
    %20 = arith.mulf %19, %2 : vector<32x128xf32>
    %21 = arith.addf %17, %20 : vector<32x128xf32>
    %c0_12 = arith.constant 0 : index
    %c0_13 = arith.constant 0 : index
    %22 = vector.load %arg6[%c0_12, %c0_13] : memref<32x128xf32, #tpu.memory_space<vmem>>, vector<32x128xf32>
    tpu.vector_store %arg6[%c0_12, %c0_13], %21 {strides = array<i32>} : memref<32x128xf32, #tpu.memory_space<vmem>>, vector<32x128xf32>,
    return
  }
  func.func @transform_0(%arg0: i32) -> (i32, i32) {
    %c0_i32 = arith.constant 0 : i32
    %c0_i32_0 = arith.constant 0 : i32
    return %arg0, %c0_i32 : i32, i32
  }
  func.func @transform_1(%arg0: i32) -> (i32, i32) {
    %c0_i32 = arith.constant 0 : i32
    %c0_i32_0 = arith.constant 0 : i32
    return %arg0, %c0_i32 : i32, i32
  }
  func.func @transform_2(%arg0: i32) -> (i32, i32) {
    %c0_i32 = arith.constant 0 : i32
    %c0_i32_0 = arith.constant 0 : i32
    %c0_i32_1 = arith.constant 0 : i32
    return %c0_i32, %c0_i32_0 : i32, i32
  }
  func.func @transform_3(%arg0: i32) -> (i32, i32) {
    %c0_i32 = arith.constant 0 : i32
    %c0_i32_0 = arith.constant 0 : i32
    %c0_i32_1 = arith.constant 0 : i32
    return %c0_i32, %c0_i32_0 : i32, i32
  }
  func.func @transform_4(%arg0: i32) -> (i32, i32) {
    %c0_i32 = arith.constant 0 : i32
    %c0_i32_0 = arith.constant 0 : i32
    %c0_i32_1 = arith.constant 0 : i32
    return %c0_i32, %c0_i32_0 : i32, i32
  }
  func.func @transform_5(%arg0: i32) -> (i32, i32) {
    %c0_i32 = arith.constant 0 : i32
    %c0_i32_0 = arith.constant 0 : i32
    return %arg0, %c0_i32 : i32, i32
  }
}

module attributes {stable_mosaic.version = 11 : i64} {
  func.func @gated_skip_kernel_proj(%arg0: i32, %arg1: memref<32x64xbf16, #tpu.memory_space<vmem>>, %arg2: memref<32x128xbf16, #tpu.memory_space<vmem>>, %arg3: memref<64x128xbf16, #tpu.memory_space<vmem>>, %arg4: memref<256x128xbf16, #tpu.memory_space<vmem>>, %arg5: memref<1x128xf32, #tpu.memory_space<vmem>>, %arg6: memref<32x128xf32, #tpu.memory_space<vmem>>) attributes {dimension_semantics = [#tpu.dimension_semantics<parallel>], iteration_bounds = array<i64: 2>, scalar_prefetch = 0 : i64, scratch_operands = 0 : i64, tpu.core_type = #tpu.core_type<tc>, window_params = [{transform_indices = @transform_0, window_bounds = array<i64: 32, 64>}, {transform_indices = @transform_1, window_bounds = array<i64: 32, 128>}, {pipeline_mode = #tpu.pipeline_mode<synchronous>, transform_indices = @transform_2, window_bounds = array<i64: 64, 128>}, {pipeline_mode = #tpu.pipeline_mode<synchronous>, transform_indices = @transform_3, window_bounds = array<i64: 256, 128>}, {pipeline_mode = #tpu.pipeline_mode<synchronous>, transform_indices = @transform_4, window_bounds = array<i64: 1, 128>}, {transform_indices = @transform_5, window_bounds = array<i64: 32, 128>}]} {
    %c0 = arith.constant 0 : index
    %c0_0 = arith.constant 0 : index
    %0 = vector.load %arg1[%c0, %c0_0] : memref<32x64xbf16, #tpu.memory_space<vmem>>, vector<32x64xbf16>
    %c0_1 = arith.constant 0 : index
    %c0_2 = arith.constant 0 : index
    %1 = vector.load %arg3[%c0_1, %c0_2] : memref<64x128xbf16, #tpu.memory_space<vmem>>, vector<64x128xbf16>
    %cst = arith.constant dense<0.000000e+00> : vector<32x128xf32>
    %2 = tpu.matmul %0, %1, %cst {dimension_numbers = #tpu.dot_dimension_numbers<[1], [0], [0], [1], [0, 0, 1, 1], [], []>} : vector<32x64xbf16>, vector<64x128xbf16>, vector<32x128xf32> -> vector<32x128xf32>
    %3 = arith.truncf %2 : vector<32x128xf32> to vector<32x128xbf16>
    %c0_3 = arith.constant 0 : index
    %c0_4 = arith.constant 0 : index
    %4 = vector.load %arg2[%c0_3, %c0_4] : memref<32x128xbf16, #tpu.memory_space<vmem>>, vector<32x128xbf16>
    %5 = arith.extf %4 : vector<32x128xbf16> to vector<32x128xf32>
    %6 = tpu.concatenate %3, %4 in 1 : vector<32x128xbf16>, vector<32x128xbf16> -> vector<32x256xbf16>
    %c0_5 = arith.constant 0 : index
    %c0_6 = arith.constant 0 : index
    %7 = vector.load %arg4[%c0_5, %c0_6] : memref<256x128xbf16, #tpu.memory_space<vmem>>, vector<256x128xbf16>
    %cst_7 = arith.constant dense<0.000000e+00> : vector<32x128xf32>
    %8 = tpu.matmul %6, %7, %cst_7 {dimension_numbers = #tpu.dot_dimension_numbers<[1], [0], [0], [1], [0, 0, 1, 1], [], []>} : vector<32x256xbf16>, vector<256x128xbf16>, vector<32x128xf32> -> vector<32x128xf32>
    %c0_8 = arith.constant 0 : index
    %c0_9 = arith.constant 0 : index
    %9 = vector.load %arg5[%c0_8, %c0_9] : memref<1x128xf32, #tpu.memory_space<vmem>>, vector<1x128xf32>
    %10 = vector.broadcast %9 : vector<1x128xf32> to vector<32x128xf32>
    %11 = arith.addf %8, %10 : vector<32x128xf32>
    %12 = arith.negf %11 : vector<32x128xf32>
    %13 = math.exp %12 : vector<32x128xf32>
    %cst_10 = arith.constant 1.000000e+00 : f32
    %14 = vector.broadcast %cst_10 : f32 to vector<32x128xf32>
    %15 = arith.addf %14, %13 : vector<32x128xf32>
    %16 = arith.divf %14, %15 : vector<32x128xf32>
    %17 = arith.mulf %16, %5 : vector<32x128xf32>
    %cst_11 = arith.constant 1.000000e+00 : f32
    %18 = vector.broadcast %cst_11 : f32 to vector<32x128xf32>
    %19 = arith.subf %18, %16 : vector<32x128xf32>
    %20 = arith.mulf %19, %2 : vector<32x128xf32>
    %21 = arith.addf %17, %20 : vector<32x128xf32>
    %c0_12 = arith.constant 0 : index
    %c0_13 = arith.constant 0 : index
    %22 = vector.load %arg6[%c0_12, %c0_13] : memref<32x128xf32, #tpu.memory_space<vmem>>, vector<32x128xf32>
    tpu.vector_store %arg6[%c0_12, %c0_13], %21 {strides = array<i32>} : memref<32x128xf32, #tpu.memory_space<vmem>>, vector<32x128xf32>,
    return
  }
  func.func @transform_0(%arg0: i32) -> (i32, i32) {
    %c0_i32 = arith.constant 0 : i32
    %c0_i32_0 = arith.constant 0 : i32
    return %arg0, %c0_i32 : i32, i32
  }
  func.func @transform_1(%arg0: i32) -> (i32, i32) {
    %c0_i32 = arith.constant 0 : i32
    %c0_i32_0 = arith.constant 0 : i32
    return %arg0, %c0_i32 : i32, i32
  }
  func.func @transform_2(%arg0: i32) -> (i32, i32) {
    %c0_i32 = arith.constant 0 : i32
    %c0_i32_0 = arith.constant 0 : i32
    %c0_i32_1 = arith.constant 0 : i32
    return %c0_i32, %c0_i32_0 : i32, i32
  }
  func.func @transform_3(%arg0: i32) -> (i32, i32) {
    %c0_i32 = arith.constant 0 : i32
    %c0_i32_0 = arith.constant 0 : i32
    %c0_i32_1 = arith.constant 0 : i32
    return %c0_i32, %c0_i32_0 : i32, i32
  }
  func.func @transform_4(%arg0: i32) -> (i32, i32) {
    %c0_i32 = arith.constant 0 : i32
    %c0_i32_0 = arith.constant 0 : i32
    %c0_i32_1 = arith.constant 0 : i32
    return %c0_i32, %c0_i32_0 : i32, i32
  }
  func.func @transform_5(%arg0: i32) -> (i32, i32) {
    %c0_i32 = arith.constant 0 : i32
    %c0_i32_0 = arith.constant 0 : i32
    return %arg0, %c0_i32 : i32, i32
  }
}

</mosaic_0001>

<llo_original>
// kernel: tpu_custom_call.1
$region0: #{tpu_custom_call.1}
  #allocation0 [shape = 'u32[]', space=smem, size = 0x4, offset = 0x4, fixed_abs, tag = 'smem constant byte address 0x4 - core index']
  #allocation1 [shape = 'u32[144,128]{1,0:T(1,128)}', space=vmem, size = 0x12000, scoped, tag = 'internal scratch']
  %s0 = inlined_call_operand.hbm [shape: bf16[64,64], index: 0, kind: input, shape index: {}]
  %s1 = inlined_call_operand.hbm [shape: bf16[64,128], index: 1, kind: input, shape index: {}]
  %s2 = inlined_call_operand.hbm [shape: bf16[64,128], index: 2, kind: input, shape index: {}]
  %s3 = inlined_call_operand.hbm [shape: bf16[256,128], index: 3, kind: input, shape index: {}]
  %s4 = inlined_call_operand.vmem [shape: f32[1,128], index: 4, kind: input, shape index: {}]
  %s5 = inlined_call_operand.hbm [shape: f32[64,128], index: 5, kind: output, shape index: {}]
  %s6 = sld [smem:[#allocation0]]
  $region69: #{tpu_custom_call.1} parent=0
    _
  %s8 = ssub.s32 1, %s6
  %s9 = scalar_select 0, %s8, %s6
  $region1: #{tpu_custom_call.1} parent=0
    #allocation2 [shape = 'u8[16384]{0}', space=vmem, size = 0x4000, scoped, tag = 'input window, operand 0']
    #allocation3 [shape = 's32[2]{0}', space=sflag, size = 0x8, scoped, tag = 'scoped memory for tpu_custom_call.1']
    #allocation4 [shape = 's32[2]{0}', space=sflag, size = 0x8, scoped, tag = 'scoped memory for tpu_custom_call.1']
    #allocation5 [shape = 'u8[16384]{0}', space=vmem, size = 0x4000, scoped, tag = 'input window, operand 1']
    #allocation6 [shape = 's32[2]{0}', space=sflag, size = 0x8, scoped, tag = 'scoped memory for tpu_custom_call.1']
    #allocation7 [shape = 'u8[16384]{0}', space=vmem, size = 0x4000, scoped, tag = 'input window, operand 2, single buffered']
    #allocation8 [shape = 'u8[65536]{0}', space=vmem, size = 0x10000, scoped, tag = 'input window, operand 3, single buffered']
    #allocation9 [shape = 's32[1]{0}', space=sflag, size = 0x4, scoped, tag = 'scoped memory for tpu_custom_call.1']
    #allocation10 [shape = 'u8[32768]{0}', space=vmem, size = 0x8000, scoped, tag = 'output window, operand 0']
    %10 = vsyncpa [#allocation3], 0
    %s11 = scalar_lea.sflag [#allocation3], 1
    %12 = vsyncpa %s11, 0
    %13 = vsyncpa [#allocation6], 0
    %s14 = scalar_lea.sflag [#allocation6], 1
    %15 = vsyncpa %s14, 0
    %16 = vsyncpa [#allocation9], 0
    %17 = vsyncpa [#allocation4], 0
    %s18 = scalar_lea.sflag [#allocation4], 1
    %19 = vsyncpa %s18, 0
    loop: start=0, step=1, limit=4
    $region2: #{tpu_custom_call.1} parent=1 // loop_pre_header
      _
    $region3: #{tpu_custom_call.1} parent=1 // loop_header
      %s21 = sphi 0, %s25
      %p22 = scmp.ge.s32.totalorder %s21, 4
      %s31 = sphi 0, %s33
      %s34 = sphi 0, %s31
      %s35 = sphi 0, %s34
      %s51 = sphi 0, %s35
      %s57 = sphi 0, %s59
      %s60 = sphi 0, %s57
      %s61 = sphi 0, %s60
      %s77 = sphi 0, %s61
      %s81 = sphi 0, %s81
      %s83 = sphi 0, %s81
      %s84 = sphi 0, %s83
      %s98 = sphi 0, %s84
      %s102 = sphi 0, %s102
      %s104 = sphi 0, %s102
      %s105 = sphi 0, %s104
      %s119 = sphi 0, %s105
      %s123 = sphi 0, %s123
      %s125 = sphi 0, %s123
      %s126 = sphi 0, %s125
      %s140 = sphi 0, %s126
      %s146 = sphi 0, %s148
      %s149 = sphi 0, %s146
      %s150 = sphi 0, %s149
      %s166 = sphi 0, %s150
    $region4: #{tpu_custom_call.1} parent=1 // loop_header_branch
      %24 = sbr.rel (%p22) target = $region8
    $region5: #{tpu_custom_call.1} parent=1 // loop_body
      %s26 = ssub.s32 %s21, 1
      %s27 = ssub.s32 %s21, 2
      %s28 = sadd.s32 %s21, 1
      %s29 = ssub.s32 %s21, %s28
      %p30 = scmp.eq.s32.totalorder %s29, 0
      %s32 = sadd.s32 %s31, 1
      %s33 = scalar_select %p30, %s31, %s32
      %p36 = pneg %p30
      %p37 = scmp.eq.s32.totalorder %s21, 1
      %p38 = por %p36, %p37
      %p39 = scmp.ne.s32.totalorder %s31, %s34
      %p40 = scmp.eq.s32.totalorder %s21, 0
      %p41 = por %p39, %p40
      %p42 = scmp.ne.s32.totalorder %s31, %s34
      %p43 = scmp.eq.s32.totalorder %s26, 1
      %p44 = por %p42, %p43
      %p45 = scmp.ne.s32.totalorder %s34, %s35
      %p46 = scmp.eq.s32.totalorder %s26, 0
      %p47 = por %p45, %p46
      %p48 = scmp.ne.s32.totalorder %s34, %s35
      %p49 = scmp.eq.s32.totalorder %s27, 1
      %p50 = por %p48, %p49
      %p52 = scmp.ne.s32.totalorder %s35, %s51
      %p53 = scmp.eq.s32.totalorder %s27, 0
      %p54 = por %p52, %p53
      %s55 = ssub.s32 %s21, %s28
      %p56 = scmp.eq.s32.totalorder %s55, 0
      %s58 = sadd.s32 %s57, 1
      %s59 = scalar_select %p56, %s57, %s58
      %p62 = pneg %p56
      %p63 = scmp.eq.s32.totalorder %s21, 1
      %p64 = por %p62, %p63
      %p65 = scmp.ne.s32.totalorder %s57, %s60
      %p66 = scmp.eq.s32.totalorder %s21, 0
      %p67 = por %p65, %p66
      %p68 = scmp.ne.s32.totalorder %s57, %s60
      %p69 = scmp.eq.s32.totalorder %s26, 1
      %p70 = por %p68, %p69
      %p71 = scmp.ne.s32.totalorder %s60, %s61
      %p72 = scmp.eq.s32.totalorder %s26, 0
      %p73 = por %p71, %p72
      %p74 = scmp.ne.s32.totalorder %s60, %s61
      %p75 = scmp.eq.s32.totalorder %s27, 1
      %p76 = por %p74, %p75
      %p78 = scmp.ne.s32.totalorder %s61, %s77
      %p79 = scmp.eq.s32.totalorder %s27, 0
      %p80 = por %p78, %p79
      %s82 = sadd.s32 %s81, 1
      %p85 = scmp.eq.s32.totalorder %s21, 1
      %p86 = scmp.ne.s32.totalorder %s81, %s83
      %p87 = scmp.eq.s32.totalorder %s21, 0
      %p88 = por %p86, %p87
      %p89 = scmp.ne.s32.totalorder %s81, %s83
      %p90 = scmp.eq.s32.totalorder %s26, 1
      %p91 = por %p89, %p90
      %p92 = scmp.ne.s32.totalorder %s83, %s84
      %p93 = scmp.eq.s32.totalorder %s26, 0
      %p94 = por %p92, %p93
      %p95 = scmp.ne.s32.totalorder %s83, %s84
      %p96 = scmp.eq.s32.totalorder %s27, 1
      %p97 = por %p95, %p96
      %p99 = scmp.ne.s32.totalorder %s84, %s98
      %p100 = scmp.eq.s32.totalorder %s27, 0
      %p101 = por %p99, %p100
      %s103 = sadd.s32 %s102, 1
      %p106 = scmp.eq.s32.totalorder %s21, 1
      %p107 = scmp.ne.s32.totalorder %s102, %s104
      %p108 = scmp.eq.s32.totalorder %s21, 0
      %p109 = por %p107, %p108
      %p110 = scmp.ne.s32.totalorder %s102, %s104
      %p111 = scmp.eq.s32.totalorder %s26, 1
      %p112 = por %p110, %p111
      %p113 = scmp.ne.s32.totalorder %s104, %s105
      %p114 = scmp.eq.s32.totalorder %s26, 0
      %p115 = por %p113, %p114
      %p116 = scmp.ne.s32.totalorder %s104, %s105
      %p117 = scmp.eq.s32.totalorder %s27, 1
      %p118 = por %p116, %p117
      %p120 = scmp.ne.s32.totalorder %s105, %s119
      %p121 = scmp.eq.s32.totalorder %s27, 0
      %p122 = por %p120, %p121
      %s124 = sadd.s32 %s123, 1
      %p127 = scmp.eq.s32.totalorder %s21, 1
      %p128 = scmp.ne.s32.totalorder %s123, %s125
      %p129 = scmp.eq.s32.totalorder %s21, 0
      %p130 = por %p128, %p129
      %p131 = scmp.ne.s32.totalorder %s123, %s125
      %p132 = scmp.eq.s32.totalorder %s26, 1
      %p133 = por %p131, %p132
      %p134 = scmp.ne.s32.totalorder %s125, %s126
      %p135 = scmp.eq.s32.totalorder %s26, 0
      %p136 = por %p134, %p135
      %p137 = scmp.ne.s32.totalorder %s125, %s126
      %p138 = scmp.eq.s32.totalorder %s27, 1
      %p139 = por %p137, %p138
      %p141 = scmp.ne.s32.totalorder %s126, %s140
      %p142 = scmp.eq.s32.totalorder %s27, 0
      %p143 = por %p141, %p142
      %s144 = ssub.s32 %s21, %s28
      %p145 = scmp.eq.s32.totalorder %s144, 0
      %s147 = sadd.s32 %s146, 1
      %s148 = scalar_select %p145, %s146, %s147
      %p151 = pneg %p145
      %p152 = scmp.eq.s32.totalorder %s21, 1
      %p153 = por %p151, %p152
      %p154 = scmp.ne.s32.totalorder %s146, %s149
      %p155 = scmp.eq.s32.totalorder %s21, 0
      %p156 = por %p154, %p155
      %p157 = scmp.ne.s32.totalorder %s146, %s149
      %p158 = scmp.eq.s32.totalorder %s26, 1
      %p159 = por %p157, %p158
      %p160 = scmp.ne.s32.totalorder %s149, %s150
      %p161 = scmp.eq.s32.totalorder %s26, 0
      %p162 = por %p160, %p161
      %p163 = scmp.ne.s32.totalorder %s149, %s150
      %p164 = scmp.eq.s32.totalorder %s27, 1
      %p165 = por %p163, %p164
      %p167 = scmp.ne.s32.totalorder %s150, %s166
      %p168 = scmp.eq.s32.totalorder %s27, 0
      %p169 = por %p167, %p168
      %p170 = scmp.le.s32.totalorder 1, %s21
      %p171 = scmp.lt.s32.totalorder %s21, 3
      %p172 = pnand %p170, %p171
      %p173 = pneg %p172
      // Predicated region
      $region9: #{tpu_custom_call.1} parent=5 // pred_check
        _
      $region10: #{tpu_custom_call.1} parent=5 // pred_check_branch
        %175 = sbr.rel (%p172) target = $region12
      $region11: #{tpu_custom_call.1} parent=5 // pred_region
        %s176 = ssub.s32 %s21, 1
        // Predicated region
        $region13: #{tpu_custom_call.1} parent=11 // pred_check
          %p177 = pneg %p94
        $region14: #{tpu_custom_call.1} parent=11 // pred_check_branch
          %179 = sbr.rel (%p177) target = $region16
        $region15: #{tpu_custom_call.1} parent=11 // pred_region
          %s181 = ssub.s32 512, 512
          %182 = vsyncadd [#allocation6], %s181
          %s183 = sshll.u32 [#allocation7], 4
          %s184 = int_to_ptr.vmem [resolvable:$true] %s183
          %189 = dma.hbm_to_vmem [thread:$0]  %s2, 512, %s184, [#allocation6], 64, 64, 4
        $region16: #{tpu_custom_call.1} parent=11 // pred_fallthru
          _
        // Predicated region
        $region17: #{tpu_custom_call.1} parent=11 // pred_check
          %p190 = pneg %p115
        $region18: #{tpu_custom_call.1} parent=11 // pred_check_branch
          %192 = sbr.rel (%p190) target = $region20
        $region19: #{tpu_custom_call.1} parent=11 // pred_region
          %s194 = ssub.s32 2048, 2048
          %195 = vsyncadd [#allocation9], %s194
          %s196 = sshll.u32 [#allocation8], 4
          %s197 = int_to_ptr.vmem [resolvable:$true] %s196
          %202 = dma.hbm_to_vmem [thread:$0]  %s3, 2048, %s197, [#allocation9], 64, 64, 4
        $region20: #{tpu_custom_call.1} parent=11 // pred_fallthru
          _
        // Predicated region
        $region21: #{tpu_custom_call.1} parent=11 // pred_check
          %p203 = pneg %p136
        $region22: #{tpu_custom_call.1} parent=11 // pred_check_branch
          %205 = sbr.rel (%p203) target = $region24
        $region23: #{tpu_custom_call.1} parent=11 // pred_region
          _
        $region24: #{tpu_custom_call.1} parent=11 // pred_fallthru
          _
      $region12: #{tpu_custom_call.1} parent=5 // pred_fallthru
        _
      %p206 = scmp.lt.s32.totalorder %s21, 2
      // Predicated region
      $region25: #{tpu_custom_call.1} parent=5 // pred_check
        %p207 = pneg %p206
      $region26: #{tpu_custom_call.1} parent=5 // pred_check_branch
        %209 = sbr.rel (%p207) target = $region28
      $region27: #{tpu_custom_call.1} parent=5 // pred_region
        // Predicated region
        $region29: #{tpu_custom_call.1} parent=27 // pred_check
          %p210 = pneg %p41
        $region30: #{tpu_custom_call.1} parent=27 // pred_check_branch
          %212 = sbr.rel (%p210) target = $region32
        $region31: #{tpu_custom_call.1} parent=27 // pred_region
          %s213 = sand.u32 %s31, 1
          %s214 = scalar_lea.sflag [#allocation3], %s213
          %s215 = sand.u32 %s31, 1
          %s216 = smul.addr %s215, 16
          %s217 = scalar_lea.vmem [#allocation2], %s216
          %s218 = smul.u32 4, %s21
          %s220 = ssub.s32 256, 256
          %221 = vsyncadd %s214, %s220
          %s222 = smul.addr %s218, 64
          %s223 = scalar_lea.hbm %s0, %s222
          %s224 = sshll.u32 %s217, 4
          %s225 = int_to_ptr.vmem [resolvable:$true] %s224
          %230 = dma.hbm_to_vmem [thread:$0]  %s223, 256, %s225, %s214, 64, 64, 4
        $region32: #{tpu_custom_call.1} parent=27 // pred_fallthru
          _
        // Predicated region
        $region33: #{tpu_custom_call.1} parent=27 // pred_check
          %p231 = pneg %p67
        $region34: #{tpu_custom_call.1} parent=27 // pred_check_branch
          %233 = sbr.rel (%p231) target = $region36
        $region35: #{tpu_custom_call.1} parent=27 // pred_region
          %s234 = sand.u32 %s21, 1
          %s235 = scalar_lea.sflag [#allocation6], %s234
          %s236 = sand.u32 %s57, 1
          %s237 = smul.addr %s236, 16
          %s238 = scalar_lea.vmem [#allocation5], %s237
          %s239 = smul.u32 4, %s21
          %s241 = ssub.s32 256, 256
          %242 = vsyncadd %s235, %s241
          %s243 = smul.addr %s239, 64
          %s244 = scalar_lea.hbm %s1, %s243
          %s245 = sshll.u32 %s238, 4
          %s246 = int_to_ptr.vmem [resolvable:$true] %s245
          %251 = dma.hbm_to_vmem [thread:$0]  %s244, 256, %s246, %s235, 64, 64, 4
        $region36: #{tpu_custom_call.1} parent=27 // pred_fallthru
          _
      $region28: #{tpu_custom_call.1} parent=5 // pred_fallthru
        _
      %p252 = scmp.le.s32.totalorder 1, %s21
      %p253 = scmp.lt.s32.totalorder %s21, 3
      %p254 = pnand %p252, %p253
      %p255 = pneg %p254
      // Predicated region
      $region37: #{tpu_custom_call.1} parent=5 // pred_check
        _
      $region38: #{tpu_custom_call.1} parent=5 // pred_check_branch
        %257 = sbr.rel (%p254) target = $region40
      $region39: #{tpu_custom_call.1} parent=5 // pred_region
        %s258 = ssub.s32 %s21, 1
        %s259 = sand.u32 %s34, 1
        %s260 = scalar_lea.sflag [#allocation3], %s259
        %s261 = sand.u32 %s34, 1
        %s262 = smul.addr %s261, 16
        %s263 = scalar_lea.vmem [#allocation2], %s262
        // Predicated region
        $region41: #{tpu_custom_call.1} parent=39 // pred_check
          %p264 = pneg %p47
        $region42: #{tpu_custom_call.1} parent=39 // pred_check_branch
          %266 = sbr.rel (%p264) target = $region44
        $region43: #{tpu_custom_call.1} parent=39 // pred_region
          %267 = dma.done %s260, 256
        $region44: #{tpu_custom_call.1} parent=39 // pred_fallthru
          _
        %s268 = sand.u32 %s26, 1
        %s269 = scalar_lea.sflag [#allocation6], %s268
        %s270 = sand.u32 %s60, 1
        %s271 = smul.addr %s270, 16
        %s272 = scalar_lea.vmem [#allocation5], %s271
        // Predicated region
        $region45: #{tpu_custom_call.1} parent=39 // pred_check
          %p273 = pneg %p73
        $region46: #{tpu_custom_call.1} parent=39 // pred_check_branch
          %275 = sbr.rel (%p273) target = $region48
        $region47: #{tpu_custom_call.1} parent=39 // pred_region
          %276 = dma.done %s269, 256
        $region48: #{tpu_custom_call.1} parent=39 // pred_fallthru
          _
        // Predicated region
        $region49: #{tpu_custom_call.1} parent=39 // pred_check
          %p277 = pneg %p94
        $region50: #{tpu_custom_call.1} parent=39 // pred_check_branch
          %279 = sbr.rel (%p277) target = $region52
        $region51: #{tpu_custom_call.1} parent=39 // pred_region
          %280 = dma.done [#allocation6], 512
        $region52: #{tpu_custom_call.1} parent=39 // pred_fallthru
          _
        // Predicated region
        $region53: #{tpu_custom_call.1} parent=39 // pred_check
          %p281 = pneg %p115
        $region54: #{tpu_custom_call.1} parent=39 // pred_check_branch
          %283 = sbr.rel (%p281) target = $region56
        $region55: #{tpu_custom_call.1} parent=39 // pred_region
          %284 = dma.done [#allocation9], 2048
        $region56: #{tpu_custom_call.1} parent=39 // pred_fallthru
          _
        %s285 = sand.u32 %s34, 1
        %s286 = scalar_lea.sflag [#allocation3], %s285
        %s287 = sand.u32 %s34, 1
        %s288 = smul.addr %s287, 16
        %s289 = scalar_lea.vmem [#allocation2], %s288
        %p290 = pneg %p47
        %p291 = pneg %p44
        %s292 = sand.u32 %s26, 1
        %s293 = scalar_lea.sflag [#allocation6], %s292
        %s294 = sand.u32 %s60, 1
        %s295 = smul.addr %s294, 16
        %s296 = scalar_lea.vmem [#allocation5], %s295
        %p297 = pneg %p73
        %p298 = pneg %p70
        %p299 = pneg %p94
        %p300 = pneg %p91
        %p301 = pneg %p115
        %p302 = pneg %p112
        %p303 = pneg %p136
        %p304 = pneg %p133
        %p305 = pneg %p162
        %p306 = pneg %p159
        %s307 = sand.u32 %s149, 1
        %s308 = scalar_lea.sflag [#allocation4], %s307
        %s309 = sand.u32 %s149, 1
        %s310 = smul.addr %s309, 32
        %s311 = scalar_lea.vmem [#allocation10], %s310
        %s312 = smul.u32 4, %s26
        %s313 = smul.u32 4, %s26
        %s314 = smul.u32 4, %s26
        %v316 = vld [vmem:[%s263] sm:$0xf]
        %v317 = vld [vmem:[%s263 + $0x4] sm:$0xf]
        %v318 = vld [vmem:[%s263 + $0x8] sm:$0xf]
        %v319 = vld [vmem:[%s263 + $0xc] sm:$0xf]
        %v320 = vld [vmem:[#allocation7] sm:$0xf]
        %v321 = vld [vmem:[#allocation7 + $0x4] sm:$0xf]
        %v322 = vld [vmem:[#allocation7 + $0x8] sm:$0xf]
        %v323 = vld [vmem:[#allocation7 + $0xc] sm:$0xf]
        %v324 = vld [vmem:[#allocation7 + $0x10] sm:$0xf]
        %v325 = vld [vmem:[#allocation7 + $0x14] sm:$0xf]
        %v326 = vld [vmem:[#allocation7 + $0x18] sm:$0xf]
        %v327 = vld [vmem:[#allocation7 + $0x1c] sm:$0xf]
        %v332 = vunpack.c.l.b16 %v316
        %v333 = vunpack.c.l.b16 %v317
        %v334 = vunpack.c.l.b16 %v318
        %v335 = vunpack.c.l.b16 %v319
        %v336 = vpack.c.b16 %v333, %v332
        %v337 = vpack.c.b16 %v335, %v334
        %v346 = vunpack.c.l.b16 %v320
        %v347 = vunpack.c.l.b16 %v321
        %v348 = vunpack.c.l.b16 %v322
        %v349 = vunpack.c.l.b16 %v323
        %v350 = vunpack.c.l.b16 %v324
        %v351 = vunpack.c.l.b16 %v325
        %v352 = vunpack.c.l.b16 %v326
        %v353 = vunpack.c.l.b16 %v327
        %v354 = vpack.c.b16 %v347, %v346
        %v355 = vpack.c.b16 %v349, %v348
        %v356 = vpack.c.b16 %v351, %v350
        %v357 = vpack.c.b16 %v353, %v352
        %vm362 = vcmask 523264
        %v364 = vsel %vm362, %v336, 0
        %v367 = vsel %vm362, %v337, 0
        %369 = vmatprep.subr.bf16.mxu0 0
        %370 = vmatpush1.bf16.msra.mxu0 %v354
        %371 = vmatprep.subr.bf16.mxu0 0
        %372 = vmatpush1.bf16.msra.mxu0 %v355
        %373 = vmatprep.subr.bf16.mxu0 0
        %374 = vmatpush1.bf16.msra.mxu0 %v356
        %375 = vmatprep.subr.bf16.mxu0 0
        %376 = vmatpush1.bf16.msra.mxu0 %v357
        %377 = vmatprep.subr.bf16.mxu0 0
        %378 = vmatpush1.bf16.msra.mxu0 0
        %379 = vmatprep.subr.bf16.mxu0 0
        %380 = vmatpush1.bf16.msra.mxu0 0
        %381 = vmatprep.subr.bf16.mxu0 0
        %382 = vmatpush1.bf16.msra.mxu0 0
        %383 = vmatprep.subr.bf16.mxu0 0
        %384 = vmatpush1.bf16.msra.mxu0 0
        %385 = vmatprep.subr.bf16.mxu0 0
        %386 = vmatpush1.bf16.msra.mxu0 0
        %387 = vmatprep.subr.bf16.mxu0 0
        %388 = vmatpush1.bf16.msra.mxu0 0
        %389 = vmatprep.subr.bf16.mxu0 0
        %390 = vmatpush1.bf16.msra.mxu0 0
        %391 = vmatprep.subr.bf16.mxu0 0
        %392 = vmatpush1.bf16.msra.mxu0 0
        %393 = vmatprep.subr.bf16.mxu0 0
        %394 = vmatpush1.bf16.msra.mxu0 0
        %395 = vmatprep.subr.bf16.mxu0 0
        %396 = vmatpush1.bf16.msra.mxu0 0
        %397 = vmatprep.subr.bf16.mxu0 0
        %398 = vmatpush1.bf16.msra.mxu0 0
        %399 = vmatprep.subr.bf16.mxu0 0
        %400 = vmatpush1.bf16.msra.mxu0 0
        %401 = vmatprep.mubr.bf16.mxu0 0
        %402 = vmatmul.mubr.bf16.gmra.mrb[0].mxu0 %v364
        %v403 = vpop.f32.mrb[0].mxu0
        %v404 = vadd.f32 0.0, %v403
        %v405 = vpop.f32.mrb[0].mxu0
        %v406 = vpop.f32.mrb[0].mxu0
        %v407 = vadd.f32 0.0, %v406
        %v408 = vpop.f32.mrb[0].mxu0
        %409 = vmatprep.mubr.bf16.mxu0 0
        %410 = vmatmul.mubr.bf16.gmra.mrb[0].mxu0 %v367
        %v411 = vpop.f32.mrb[0].mxu0
        %v412 = vadd.f32 0.0, %v411
        %v413 = vpop.f32.mrb[0].mxu0
        %v414 = vpop.f32.mrb[0].mxu0
        %v415 = vadd.f32 0.0, %v414
        %v416 = vpop.f32.mrb[0].mxu0
        %417 = vdwg.mxu0
        %v418 = vpack.c.bf16 %v407, %v404
        %v419 = vpack.c.bf16 %v415, %v412
        %v420 = vld [vmem:[%s272] sm:$0xf]
        %v421 = vld [vmem:[%s272 + $0x4] sm:$0xf]
        %v422 = vld [vmem:[%s272 + $0x8] sm:$0xf]
        %v423 = vld [vmem:[%s272 + $0xc] sm:$0xf]
        %v424 = vunpack.c.l.bf16 %v420
        %v425 = vunpack.c.l.bf16 %v421
        %v426 = vunpack.c.l.bf16 %v422
        %v427 = vunpack.c.l.bf16 %v423
        %v432 = vunpack.c.l.b16 %v420
        %v433 = vunpack.c.l.b16 %v421
        %v434 = vunpack.c.l.b16 %v422
        %v435 = vunpack.c.l.b16 %v423
        %v436 = vpack.c.b16 %v433, %v432
        %v437 = vpack.c.b16 %v435, %v434
        %v440 = vld [vmem:[#allocation8] sm:$0xf]
        %v441 = vld [vmem:[#allocation8 + $0x4] sm:$0xf]
        %v442 = vld [vmem:[#allocation8 + $0x8] sm:$0xf]
        %v443 = vld [vmem:[#allocation8 + $0xc] sm:$0xf]
        %v444 = vld [vmem:[#allocation8 + $0x10] sm:$0xf]
        %v445 = vld [vmem:[#allocation8 + $0x14] sm:$0xf]
        %v446 = vld [vmem:[#allocation8 + $0x18] sm:$0xf]
        %v447 = vld [vmem:[#allocation8 + $0x1c] sm:$0xf]
        %v448 = vld [vmem:[#allocation8 + $0x20] sm:$0xf]
        %v449 = vld [vmem:[#allocation8 + $0x24] sm:$0xf]
        %v450 = vld [vmem:[#allocation8 + $0x28] sm:$0xf]
        %v451 = vld [vmem:[#allocation8 + $0x2c] sm:$0xf]
        %v452 = vld [vmem:[#allocation8 + $0x30] sm:$0xf]
        %v453 = vld [vmem:[#allocation8 + $0x34] sm:$0xf]
        %v454 = vld [vmem:[#allocation8 + $0x38] sm:$0xf]
        %v455 = vld [vmem:[#allocation8 + $0x3c] sm:$0xf]
        %v456 = vld [vmem:[#allocation8 + $0x40] sm:$0xf]
        %v457 = vld [vmem:[#allocation8 + $0x44] sm:$0xf]
        %v458 = vld [vmem:[#allocation8 + $0x48] sm:$0xf]
        %v459 = vld [vmem:[#allocation8 + $0x4c] sm:$0xf]
        %v460 = vld [vmem:[#allocation8 + $0x50] sm:$0xf]
        %v461 = vld [vmem:[#allocation8 + $0x54] sm:$0xf]
        %v462 = vld [vmem:[#allocation8 + $0x58] sm:$0xf]
        %v463 = vld [vmem:[#allocation8 + $0x5c] sm:$0xf]
        %v464 = vld [vmem:[#allocation8 + $0x60] sm:$0xf]
        %v465 = vld [vmem:[#allocation8 + $0x64] sm:$0xf]
        %v466 = vld [vmem:[#allocation8 + $0x68] sm:$0xf]
        %v467 = vld [vmem:[#allocation8 + $0x6c] sm:$0xf]
        %v468 = vld [vmem:[#allocation8 + $0x70] sm:$0xf]
        %v469 = vld [vmem:[#allocation8 + $0x74] sm:$0xf]
        %v470 = vld [vmem:[#allocation8 + $0x78] sm:$0xf]
        %v471 = vld [vmem:[#allocation8 + $0x7c] sm:$0xf]
        %v472 = vld [vmem:[%s4] sm:$0x1]
        %v474 = vlaneseq
        %v475 = vshrl.u32 %v474, 7
        %v476 = vsub.s32 0, %v475
        %v477 = vrot.slane %v472, %v476
        %v511 = vunpack.c.l.b16 %v440
        %v512 = vunpack.c.l.b16 %v441
        %v513 = vunpack.c.l.b16 %v442
        %v514 = vunpack.c.l.b16 %v443
        %v515 = vunpack.c.l.b16 %v444
        %v516 = vunpack.c.l.b16 %v445
        %v517 = vunpack.c.l.b16 %v446
        %v518 = vunpack.c.l.b16 %v447
        %v519 = vunpack.c.l.b16 %v448
        %v520 = vunpack.c.l.b16 %v449
        %v521 = vunpack.c.l.b16 %v450
        %v522 = vunpack.c.l.b16 %v451
        %v523 = vunpack.c.l.b16 %v452
        %v524 = vunpack.c.l.b16 %v453
        %v525 = vunpack.c.l.b16 %v454
        %v526 = vunpack.c.l.b16 %v455
        %v527 = vunpack.c.l.b16 %v456
        %v528 = vunpack.c.l.b16 %v457
        %v529 = vunpack.c.l.b16 %v458
        %v530 = vunpack.c.l.b16 %v459
        %v531 = vunpack.c.l.b16 %v460
        %v532 = vunpack.c.l.b16 %v461
        %v533 = vunpack.c.l.b16 %v462
        %v534 = vunpack.c.l.b16 %v463
        %v535 = vunpack.c.l.b16 %v464
        %v536 = vunpack.c.l.b16 %v465
        %v537 = vunpack.c.l.b16 %v466
        %v538 = vunpack.c.l.b16 %v467
        %v539 = vunpack.c.l.b16 %v468
        %v540 = vunpack.c.l.b16 %v469
        %v541 = vunpack.c.l.b16 %v470
        %v542 = vunpack.c.l.b16 %v471
        %v543 = vpack.c.b16 %v512, %v511
        %v544 = vpack.c.b16 %v514, %v513
        %v545 = vpack.c.b16 %v516, %v515
        %v546 = vpack.c.b16 %v518, %v517
        %v547 = vpack.c.b16 %v520, %v519
        %v548 = vpack.c.b16 %v522, %v521
        %v549 = vpack.c.b16 %v524, %v523
        %v550 = vpack.c.b16 %v526, %v525
        %v551 = vpack.c.b16 %v528, %v527
        %v552 = vpack.c.b16 %v530, %v529
        %v553 = vpack.c.b16 %v532, %v531
        %v554 = vpack.c.b16 %v534, %v533
        %v555 = vpack.c.b16 %v536, %v535
        %v556 = vpack.c.b16 %v538, %v537
        %v557 = vpack.c.b16 %v540, %v539
        %v558 = vpack.c.b16 %v542, %v541
        %575 = vmatprep.subr.bf16.mxu0 0
        %576 = vmatpush1.bf16.msra.mxu0 %v543
        %577 = vmatprep.subr.bf16.mxu0 0
        %578 = vmatpush1.bf16.msra.mxu0 %v544
        %579 = vmatprep.subr.bf16.mxu0 0
        %580 = vmatpush1.bf16.msra.mxu0 %v545
        %581 = vmatprep.subr.bf16.mxu0 0
        %582 = vmatpush1.bf16.msra.mxu0 %v546
        %583 = vmatprep.subr.bf16.mxu0 0
        %584 = vmatpush1.bf16.msra.mxu0 %v547
        %585 = vmatprep.subr.bf16.mxu0 0
        %586 = vmatpush1.bf16.msra.mxu0 %v548
        %587 = vmatprep.subr.bf16.mxu0 0
        %588 = vmatpush1.bf16.msra.mxu0 %v549
        %589 = vmatprep.subr.bf16.mxu0 0
        %590 = vmatpush1.bf16.msra.mxu0 %v550
        %591 = vmatprep.subr.bf16.mxu0 0
        %592 = vmatpush1.bf16.msra.mxu0 %v551
        %593 = vmatprep.subr.bf16.mxu0 0
        %594 = vmatpush1.bf16.msra.mxu0 %v552
        %595 = vmatprep.subr.bf16.mxu0 0
        %596 = vmatpush1.bf16.msra.mxu0 %v553
        %597 = vmatprep.subr.bf16.mxu0 0
        %598 = vmatpush1.bf16.msra.mxu0 %v554
        %599 = vmatprep.subr.bf16.mxu0 0
        %600 = vmatpush1.bf16.msra.mxu0 %v555
        %601 = vmatprep.subr.bf16.mxu0 0
        %602 = vmatpush1.bf16.msra.mxu0 %v556
        %603 = vmatprep.subr.bf16.mxu0 0
        %604 = vmatpush1.bf16.msra.mxu0 %v557
        %605 = vmatprep.subr.bf16.mxu0 0
        %606 = vmatpush1.bf16.msra.mxu0 %v558
        %607 = vmatprep.mubr.bf16.mxu0 %v436
        %608 = vmatmul.mubr.bf16.gmra.mrb[0].mxu0 %v418
        %v609 = vpop.f32.mrb[0].mxu0
        %v610 = vadd.f32 %v477, %v609
        %v611 = vpop.f32.mrb[0].mxu0
        %v612 = vpop.f32.mrb[0].mxu0
        %v613 = vadd.f32 %v477, %v612
        %v614 = vpop.f32.mrb[0].mxu0
        %615 = vmatprep.mubr.bf16.mxu0 %v437
        %616 = vmatmul.mubr.bf16.gmra.mrb[0].mxu0 %v419
        %v617 = vpop.f32.mrb[0].mxu0
        %v618 = vadd.f32 %v477, %v617
        %v619 = vpop.f32.mrb[0].mxu0
        %v620 = vpop.f32.mrb[0].mxu0
        %v621 = vadd.f32 %v477, %v620
        %v622 = vpop.f32.mrb[0].mxu0
        %623 = vdwg.mxu0
        %v624 = vxor.u32 %v610, 2147483648
        %v625 = vxor.u32 %v613, 2147483648
        %v626 = vxor.u32 %v618, 2147483648
        %v627 = vxor.u32 %v621, 2147483648
        %v628 = vmul.f32 %v624, 1.442695
        %v629 = vpow.pop %v628
        %v630 = vmul.f32 %v625, 1.442695
        %v631 = vpow.pop %v630
        %v632 = vmul.f32 %v626, 1.442695
        %v633 = vpow.pop %v632
        %v634 = vmul.f32 %v627, 1.442695
        %v635 = vpow.pop %v634
        %v636 = vadd.f32 %v629, 1.0
        %v637 = vadd.f32 %v631, 1.0
        %v638 = vadd.f32 %v633, 1.0
        %v639 = vadd.f32 %v635, 1.0
        %v640 = vrcp.pop %v636
        %v641 = vmul.f32 1.0, %v640
        %v642 = vrcp.pop %v637
        %v643 = vmul.f32 1.0, %v642
        %v644 = vrcp.pop %v638
        %v645 = vmul.f32 1.0, %v644
        %v646 = vrcp.pop %v639
        %v647 = vmul.f32 1.0, %v646
        %v648 = vmul.f32 %v641, %v424
        %v649 = vmul.f32 %v643, %v425
        %v650 = vmul.f32 %v645, %v426
        %v651 = vmul.f32 %v647, %v427
        %v652 = vsub.f32 1.0, %v641
        %v653 = vsub.f32 1.0, %v643
        %v654 = vsub.f32 1.0, %v645
        %v655 = vsub.f32 1.0, %v647
        %v656 = vmul.f32 %v652, %v404
        %v657 = vmul.f32 %v653, %v407
        %v658 = vmul.f32 %v654, %v412
        %v659 = vmul.f32 %v655, %v415
        %v660 = vadd.f32 %v648, %v656
        %v661 = vadd.f32 %v649, %v657
        %v662 = vadd.f32 %v650, %v658
        %v663 = vadd.f32 %v651, %v659
        %664 = vst [vmem:[%s311] sm:$0xff] %v660
        %665 = vst [vmem:[%s311 + $0x8] sm:$0xff] %v661
        %666 = vst [vmem:[%s311 + $0x10] sm:$0xff] %v662
        %667 = vst [vmem:[%s311 + $0x18] sm:$0xff] %v663
        %s668 = sand.u32 %s149, 1
        %s669 = scalar_lea.sflag [#allocation4], %s668
        %s670 = sand.u32 %s149, 1
        %s671 = smul.addr %s670, 32
        %s672 = scalar_lea.vmem [#allocation10], %s671
        // Predicated region
        $region57: #{tpu_custom_call.1} parent=39 // pred_check
          %p673 = pneg %p159
        $region58: #{tpu_custom_call.1} parent=39 // pred_check_branch
          %675 = sbr.rel (%p673) target = $region60
        $region59: #{tpu_custom_call.1} parent=39 // pred_region
          %s676 = smul.u32 4, %s26
          %s678 = ssub.s32 512, 512
          %679 = vsyncadd %s669, %s678
          %s680 = smul.addr %s676, 128
          %s681 = scalar_lea.hbm %s5, %s680
          %s682 = sshll.u32 %s672, 4
          %s683 = int_to_ptr.vmem [resolvable:$true] %s682
          %688 = dma.vmem_to_hbm [thread:$0]  %s683, 512, %s681, %s669, 128, 128, 8
        $region60: #{tpu_custom_call.1} parent=39 // pred_fallthru
          _
      $region40: #{tpu_custom_call.1} parent=5 // pred_fallthru
        _
      %p689 = scmp.le.s32.totalorder 2, %s21
      // Predicated region
      $region61: #{tpu_custom_call.1} parent=5 // pred_check
        %p690 = pneg %p689
      $region62: #{tpu_custom_call.1} parent=5 // pred_check_branch
        %692 = sbr.rel (%p690) target = $region64
      $region63: #{tpu_custom_call.1} parent=5 // pred_region
        %s693 = ssub.s32 %s21, 2
        // Predicated region
        $region65: #{tpu_custom_call.1} parent=63 // pred_check
          %p694 = pneg %p165
        $region66: #{tpu_custom_call.1} parent=63 // pred_check_branch
          %696 = sbr.rel (%p694) target = $region68
        $region67: #{tpu_custom_call.1} parent=63 // pred_region
          %s697 = sand.u32 %s150, 1
          %s698 = scalar_lea.sflag [#allocation4], %s697
          %s699 = sand.u32 %s150, 1
          %s700 = smul.addr %s699, 32
          %s701 = scalar_lea.vmem [#allocation10], %s700
          %702 = dma.done %s698, 512
        $region68: #{tpu_custom_call.1} parent=63 // pred_fallthru
          _
      $region64: #{tpu_custom_call.1} parent=5 // pred_fallthru
        _
    $region6: #{tpu_custom_call.1} parent=1 // loop_footer
      %s25 = sadd.s32 1, %s21
    $region7: #{tpu_custom_call.1} parent=1 // loop_footer_branch
      %20 = sbr.rel target = $region3
    $region8: #{tpu_custom_call.1} parent=1 // loop_exit
      _
    %703 = vsyncpa [#allocation3], 1
    %s704 = scalar_lea.sflag [#allocation3], 1
    %705 = vsyncpa %s704, 1
    %706 = vsyncpa [#allocation6], 1
    %s707 = scalar_lea.sflag [#allocation6], 1
    %708 = vsyncpa %s707, 1
    %709 = vsyncpa [#allocation9], 1
    %710 = vsyncpa [#allocation4], 1
    %s711 = scalar_lea.sflag [#allocation4], 1
    %712 = vsyncpa %s711, 1

// kernel: tpu_custom_call.1
$region0: #{tpu_custom_call.1}
  #allocation0 [shape = 'u32[]', space=smem, size = 0x4, offset = 0x4, fixed_abs, tag = 'smem constant byte address 0x4 - core index']
  #allocation1 [shape = 'u32[144,128]{1,0:T(1,128)}', space=vmem, size = 0x12000, scoped, tag = 'internal scratch']
  %s0 = inlined_call_operand.hbm [shape: bf16[64,64], index: 0, kind: input, shape index: {}]
  %s1 = inlined_call_operand.hbm [shape: bf16[64,128], index: 1, kind: input, shape index: {}]
  %s2 = inlined_call_operand.hbm [shape: bf16[64,128], index: 2, kind: input, shape index: {}]
  %s3 = inlined_call_operand.hbm [shape: bf16[256,128], index: 3, kind: input, shape index: {}]
  %s4 = inlined_call_operand.vmem [shape: f32[1,128], index: 4, kind: input, shape index: {}]
  %s5 = inlined_call_operand.hbm [shape: f32[64,128], index: 5, kind: output, shape index: {}]
  %s6 = sld [smem:[#allocation0]]
  $region69: #{tpu_custom_call.1} parent=0
    _
  %s8 = ssub.s32 1, %s6
  %s9 = scalar_select 0, %s8, %s6
  $region1: #{tpu_custom_call.1} parent=0
    #allocation2 [shape = 'u8[16384]{0}', space=vmem, size = 0x4000, scoped, tag = 'input window, operand 0']
    #allocation3 [shape = 's32[2]{0}', space=sflag, size = 0x8, scoped, tag = 'scoped memory for tpu_custom_call.1']
    #allocation4 [shape = 's32[2]{0}', space=sflag, size = 0x8, scoped, tag = 'scoped memory for tpu_custom_call.1']
    #allocation5 [shape = 'u8[16384]{0}', space=vmem, size = 0x4000, scoped, tag = 'input window, operand 1']
    #allocation6 [shape = 's32[2]{0}', space=sflag, size = 0x8, scoped, tag = 'scoped memory for tpu_custom_call.1']
    #allocation7 [shape = 'u8[16384]{0}', space=vmem, size = 0x4000, scoped, tag = 'input window, operand 2, single buffered']
    #allocation8 [shape = 'u8[65536]{0}', space=vmem, size = 0x10000, scoped, tag = 'input window, operand 3, single buffered']
    #allocation9 [shape = 's32[1]{0}', space=sflag, size = 0x4, scoped, tag = 'scoped memory for tpu_custom_call.1']
    #allocation10 [shape = 'u8[32768]{0}', space=vmem, size = 0x8000, scoped, tag = 'output window, operand 0']
    %10 = vsyncpa [#allocation3], 0
    %s11 = scalar_lea.sflag [#allocation3], 1
    %12 = vsyncpa %s11, 0
    %13 = vsyncpa [#allocation6], 0
    %s14 = scalar_lea.sflag [#allocation6], 1
    %15 = vsyncpa %s14, 0
    %16 = vsyncpa [#allocation9], 0
    %17 = vsyncpa [#allocation4], 0
    %s18 = scalar_lea.sflag [#allocation4], 1
    %19 = vsyncpa %s18, 0
    loop: start=0, step=1, limit=4
    $region2: #{tpu_custom_call.1} parent=1 // loop_pre_header
      _
    $region3: #{tpu_custom_call.1} parent=1 // loop_header
      %s21 = sphi 0, %s25
      %p22 = scmp.ge.s32.totalorder %s21, 4
      %s31 = sphi 0, %s33
      %s34 = sphi 0, %s31
      %s35 = sphi 0, %s34
      %s51 = sphi 0, %s35
      %s57 = sphi 0, %s59
      %s60 = sphi 0, %s57
      %s61 = sphi 0, %s60
      %s77 = sphi 0, %s61
      %s81 = sphi 0, %s81
      %s83 = sphi 0, %s81
      %s84 = sphi 0, %s83
      %s98 = sphi 0, %s84
      %s102 = sphi 0, %s102
      %s104 = sphi 0, %s102
      %s105 = sphi 0, %s104
      %s119 = sphi 0, %s105
      %s123 = sphi 0, %s123
      %s125 = sphi 0, %s123
      %s126 = sphi 0, %s125
      %s140 = sphi 0, %s126
      %s146 = sphi 0, %s148
      %s149 = sphi 0, %s146
      %s150 = sphi 0, %s149
      %s166 = sphi 0, %s150
    $region4: #{tpu_custom_call.1} parent=1 // loop_header_branch
      %24 = sbr.rel (%p22) target = $region8
    $region5: #{tpu_custom_call.1} parent=1 // loop_body
      %s26 = ssub.s32 %s21, 1
      %s27 = ssub.s32 %s21, 2
      %s28 = sadd.s32 %s21, 1
      %s29 = ssub.s32 %s21, %s28
      %p30 = scmp.eq.s32.totalorder %s29, 0
      %s32 = sadd.s32 %s31, 1
      %s33 = scalar_select %p30, %s31, %s32
      %p36 = pneg %p30
      %p37 = scmp.eq.s32.totalorder %s21, 1
      %p38 = por %p36, %p37
      %p39 = scmp.ne.s32.totalorder %s31, %s34
      %p40 = scmp.eq.s32.totalorder %s21, 0
      %p41 = por %p39, %p40
      %p42 = scmp.ne.s32.totalorder %s31, %s34
      %p43 = scmp.eq.s32.totalorder %s26, 1
      %p44 = por %p42, %p43
      %p45 = scmp.ne.s32.totalorder %s34, %s35
      %p46 = scmp.eq.s32.totalorder %s26, 0
      %p47 = por %p45, %p46
      %p48 = scmp.ne.s32.totalorder %s34, %s35
      %p49 = scmp.eq.s32.totalorder %s27, 1
      %p50 = por %p48, %p49
      %p52 = scmp.ne.s32.totalorder %s35, %s51
      %p53 = scmp.eq.s32.totalorder %s27, 0
      %p54 = por %p52, %p53
      %s55 = ssub.s32 %s21, %s28
      %p56 = scmp.eq.s32.totalorder %s55, 0
      %s58 = sadd.s32 %s57, 1
      %s59 = scalar_select %p56, %s57, %s58
      %p62 = pneg %p56
      %p63 = scmp.eq.s32.totalorder %s21, 1
      %p64 = por %p62, %p63
      %p65 = scmp.ne.s32.totalorder %s57, %s60
      %p66 = scmp.eq.s32.totalorder %s21, 0
      %p67 = por %p65, %p66
      %p68 = scmp.ne.s32.totalorder %s57, %s60
      %p69 = scmp.eq.s32.totalorder %s26, 1
      %p70 = por %p68, %p69
      %p71 = scmp.ne.s32.totalorder %s60, %s61
      %p72 = scmp.eq.s32.totalorder %s26, 0
      %p73 = por %p71, %p72
      %p74 = scmp.ne.s32.totalorder %s60, %s61
      %p75 = scmp.eq.s32.totalorder %s27, 1
      %p76 = por %p74, %p75
      %p78 = scmp.ne.s32.totalorder %s61, %s77
      %p79 = scmp.eq.s32.totalorder %s27, 0
      %p80 = por %p78, %p79
      %s82 = sadd.s32 %s81, 1
      %p85 = scmp.eq.s32.totalorder %s21, 1
      %p86 = scmp.ne.s32.totalorder %s81, %s83
      %p87 = scmp.eq.s32.totalorder %s21, 0
      %p88 = por %p86, %p87
      %p89 = scmp.ne.s32.totalorder %s81, %s83
      %p90 = scmp.eq.s32.totalorder %s26, 1
      %p91 = por %p89, %p90
      %p92 = scmp.ne.s32.totalorder %s83, %s84
      %p93 = scmp.eq.s32.totalorder %s26, 0
      %p94 = por %p92, %p93
      %p95 = scmp.ne.s32.totalorder %s83, %s84
      %p96 = scmp.eq.s32.totalorder %s27, 1
      %p97 = por %p95, %p96
      %p99 = scmp.ne.s32.totalorder %s84, %s98
      %p100 = scmp.eq.s32.totalorder %s27, 0
      %p101 = por %p99, %p100
      %s103 = sadd.s32 %s102, 1
      %p106 = scmp.eq.s32.totalorder %s21, 1
      %p107 = scmp.ne.s32.totalorder %s102, %s104
      %p108 = scmp.eq.s32.totalorder %s21, 0
      %p109 = por %p107, %p108
      %p110 = scmp.ne.s32.totalorder %s102, %s104
      %p111 = scmp.eq.s32.totalorder %s26, 1
      %p112 = por %p110, %p111
      %p113 = scmp.ne.s32.totalorder %s104, %s105
      %p114 = scmp.eq.s32.totalorder %s26, 0
      %p115 = por %p113, %p114
      %p116 = scmp.ne.s32.totalorder %s104, %s105
      %p117 = scmp.eq.s32.totalorder %s27, 1
      %p118 = por %p116, %p117
      %p120 = scmp.ne.s32.totalorder %s105, %s119
      %p121 = scmp.eq.s32.totalorder %s27, 0
      %p122 = por %p120, %p121
      %s124 = sadd.s32 %s123, 1
      %p127 = scmp.eq.s32.totalorder %s21, 1
      %p128 = scmp.ne.s32.totalorder %s123, %s125
      %p129 = scmp.eq.s32.totalorder %s21, 0
      %p130 = por %p128, %p129
      %p131 = scmp.ne.s32.totalorder %s123, %s125
      %p132 = scmp.eq.s32.totalorder %s26, 1
      %p133 = por %p131, %p132
      %p134 = scmp.ne.s32.totalorder %s125, %s126
      %p135 = scmp.eq.s32.totalorder %s26, 0
      %p136 = por %p134, %p135
      %p137 = scmp.ne.s32.totalorder %s125, %s126
      %p138 = scmp.eq.s32.totalorder %s27, 1
      %p139 = por %p137, %p138
      %p141 = scmp.ne.s32.totalorder %s126, %s140
      %p142 = scmp.eq.s32.totalorder %s27, 0
      %p143 = por %p141, %p142
      %s144 = ssub.s32 %s21, %s28
      %p145 = scmp.eq.s32.totalorder %s144, 0
      %s147 = sadd.s32 %s146, 1
      %s148 = scalar_select %p145, %s146, %s147
      %p151 = pneg %p145
      %p152 = scmp.eq.s32.totalorder %s21, 1
      %p153 = por %p151, %p152
      %p154 = scmp.ne.s32.totalorder %s146, %s149
      %p155 = scmp.eq.s32.totalorder %s21, 0
      %p156 = por %p154, %p155
      %p157 = scmp.ne.s32.totalorder %s146, %s149
      %p158 = scmp.eq.s32.totalorder %s26, 1
      %p159 = por %p157, %p158
      %p160 = scmp.ne.s32.totalorder %s149, %s150
      %p161 = scmp.eq.s32.totalorder %s26, 0
      %p162 = por %p160, %p161
      %p163 = scmp.ne.s32.totalorder %s149, %s150
      %p164 = scmp.eq.s32.totalorder %s27, 1
      %p165 = por %p163, %p164
      %p167 = scmp.ne.s32.totalorder %s150, %s166
      %p168 = scmp.eq.s32.totalorder %s27, 0
      %p169 = por %p167, %p168
      %p170 = scmp.le.s32.totalorder 1, %s21
      %p171 = scmp.lt.s32.totalorder %s21, 3
      %p172 = pnand %p170, %p171
      %p173 = pneg %p172
      // Predicated region
      $region9: #{tpu_custom_call.1} parent=5 // pred_check
        _
      $region10: #{tpu_custom_call.1} parent=5 // pred_check_branch
        %175 = sbr.rel (%p172) target = $region12
      $region11: #{tpu_custom_call.1} parent=5 // pred_region
        %s176 = ssub.s32 %s21, 1
        // Predicated region
        $region13: #{tpu_custom_call.1} parent=11 // pred_check
          %p177 = pneg %p94
        $region14: #{tpu_custom_call.1} parent=11 // pred_check_branch
          %179 = sbr.rel (%p177) target = $region16
        $region15: #{tpu_custom_call.1} parent=11 // pred_region
          %s181 = ssub.s32 512, 512
          %182 = vsyncadd [#allocation6], %s181
          %s183 = sshll.u32 [#allocation7], 4
          %s184 = int_to_ptr.vmem [resolvable:$true] %s183
          %189 = dma.hbm_to_vmem [thread:$0]  %s2, 512, %s184, [#allocation6], 64, 64, 4
        $region16: #{tpu_custom_call.1} parent=11 // pred_fallthru
          _
        // Predicated region
        $region17: #{tpu_custom_call.1} parent=11 // pred_check
          %p190 = pneg %p115
        $region18: #{tpu_custom_call.1} parent=11 // pred_check_branch
          %192 = sbr.rel (%p190) target = $region20
        $region19: #{tpu_custom_call.1} parent=11 // pred_region
          %s194 = ssub.s32 2048, 2048
          %195 = vsyncadd [#allocation9], %s194
          %s196 = sshll.u32 [#allocation8], 4
          %s197 = int_to_ptr.vmem [resolvable:$true] %s196
          %202 = dma.hbm_to_vmem [thread:$0]  %s3, 2048, %s197, [#allocation9], 64, 64, 4
        $region20: #{tpu_custom_call.1} parent=11 // pred_fallthru
          _
        // Predicated region
        $region21: #{tpu_custom_call.1} parent=11 // pred_check
          %p203 = pneg %p136
        $region22: #{tpu_custom_call.1} parent=11 // pred_check_branch
          %205 = sbr.rel (%p203) target = $region24
        $region23: #{tpu_custom_call.1} parent=11 // pred_region
          _
        $region24: #{tpu_custom_call.1} parent=11 // pred_fallthru
          _
      $region12: #{tpu_custom_call.1} parent=5 // pred_fallthru
        _
      %p206 = scmp.lt.s32.totalorder %s21, 2
      // Predicated region
      $region25: #{tpu_custom_call.1} parent=5 // pred_check
        %p207 = pneg %p206
      $region26: #{tpu_custom_call.1} parent=5 // pred_check_branch
        %209 = sbr.rel (%p207) target = $region28
      $region27: #{tpu_custom_call.1} parent=5 // pred_region
        // Predicated region
        $region29: #{tpu_custom_call.1} parent=27 // pred_check
          %p210 = pneg %p41
        $region30: #{tpu_custom_call.1} parent=27 // pred_check_branch
          %212 = sbr.rel (%p210) target = $region32
        $region31: #{tpu_custom_call.1} parent=27 // pred_region
          %s213 = sand.u32 %s31, 1
          %s214 = scalar_lea.sflag [#allocation3], %s213
          %s215 = sand.u32 %s31, 1
          %s216 = smul.addr %s215, 16
          %s217 = scalar_lea.vmem [#allocation2], %s216
          %s218 = smul.u32 4, %s21
          %s220 = ssub.s32 256, 256
          %221 = vsyncadd %s214, %s220
          %s222 = smul.addr %s218, 64
          %s223 = scalar_lea.hbm %s0, %s222
          %s224 = sshll.u32 %s217, 4
          %s225 = int_to_ptr.vmem [resolvable:$true] %s224
          %230 = dma.hbm_to_vmem [thread:$0]  %s223, 256, %s225, %s214, 64, 64, 4
        $region32: #{tpu_custom_call.1} parent=27 // pred_fallthru
          _
        // Predicated region
        $region33: #{tpu_custom_call.1} parent=27 // pred_check
          %p231 = pneg %p67
        $region34: #{tpu_custom_call.1} parent=27 // pred_check_branch
          %233 = sbr.rel (%p231) target = $region36
        $region35: #{tpu_custom_call.1} parent=27 // pred_region
          %s234 = sand.u32 %s21, 1
          %s235 = scalar_lea.sflag [#allocation6], %s234
          %s236 = sand.u32 %s57, 1
          %s237 = smul.addr %s236, 16
          %s238 = scalar_lea.vmem [#allocation5], %s237
          %s239 = smul.u32 4, %s21
          %s241 = ssub.s32 256, 256
          %242 = vsyncadd %s235, %s241
          %s243 = smul.addr %s239, 64
          %s244 = scalar_lea.hbm %s1, %s243
          %s245 = sshll.u32 %s238, 4
          %s246 = int_to_ptr.vmem [resolvable:$true] %s245
          %251 = dma.hbm_to_vmem [thread:$0]  %s244, 256, %s246, %s235, 64, 64, 4
        $region36: #{tpu_custom_call.1} parent=27 // pred_fallthru
          _
      $region28: #{tpu_custom_call.1} parent=5 // pred_fallthru
        _
      %p252 = scmp.le.s32.totalorder 1, %s21
      %p253 = scmp.lt.s32.totalorder %s21, 3
      %p254 = pnand %p252, %p253
      %p255 = pneg %p254
      // Predicated region
      $region37: #{tpu_custom_call.1} parent=5 // pred_check
        _
      $region38: #{tpu_custom_call.1} parent=5 // pred_check_branch
        %257 = sbr.rel (%p254) target = $region40
      $region39: #{tpu_custom_call.1} parent=5 // pred_region
        %s258 = ssub.s32 %s21, 1
        %s259 = sand.u32 %s34, 1
        %s260 = scalar_lea.sflag [#allocation3], %s259
        %s261 = sand.u32 %s34, 1
        %s262 = smul.addr %s261, 16
        %s263 = scalar_lea.vmem [#allocation2], %s262
        // Predicated region
        $region41: #{tpu_custom_call.1} parent=39 // pred_check
          %p264 = pneg %p47
        $region42: #{tpu_custom_call.1} parent=39 // pred_check_branch
          %266 = sbr.rel (%p264) target = $region44
        $region43: #{tpu_custom_call.1} parent=39 // pred_region
          %267 = dma.done %s260, 256
        $region44: #{tpu_custom_call.1} parent=39 // pred_fallthru
          _
        %s268 = sand.u32 %s26, 1
        %s269 = scalar_lea.sflag [#allocation6], %s268
        %s270 = sand.u32 %s60, 1
        %s271 = smul.addr %s270, 16
        %s272 = scalar_lea.vmem [#allocation5], %s271
        // Predicated region
        $region45: #{tpu_custom_call.1} parent=39 // pred_check
          %p273 = pneg %p73
        $region46: #{tpu_custom_call.1} parent=39 // pred_check_branch
          %275 = sbr.rel (%p273) target = $region48
        $region47: #{tpu_custom_call.1} parent=39 // pred_region
          %276 = dma.done %s269, 256
        $region48: #{tpu_custom_call.1} parent=39 // pred_fallthru
          _
        // Predicated region
        $region49: #{tpu_custom_call.1} parent=39 // pred_check
          %p277 = pneg %p94
        $region50: #{tpu_custom_call.1} parent=39 // pred_check_branch
          %279 = sbr.rel (%p277) target = $region52
        $region51: #{tpu_custom_call.1} parent=39 // pred_region
          %280 = dma.done [#allocation6], 512
        $region52: #{tpu_custom_call.1} parent=39 // pred_fallthru
          _
        // Predicated region
        $region53: #{tpu_custom_call.1} parent=39 // pred_check
          %p281 = pneg %p115
        $region54: #{tpu_custom_call.1} parent=39 // pred_check_branch
          %283 = sbr.rel (%p281) target = $region56
        $region55: #{tpu_custom_call.1} parent=39 // pred_region
          %284 = dma.done [#allocation9], 2048
        $region56: #{tpu_custom_call.1} parent=39 // pred_fallthru
          _
        %s285 = sand.u32 %s34, 1
        %s286 = scalar_lea.sflag [#allocation3], %s285
        %s287 = sand.u32 %s34, 1
        %s288 = smul.addr %s287, 16
        %s289 = scalar_lea.vmem [#allocation2], %s288
        %p290 = pneg %p47
        %p291 = pneg %p44
        %s292 = sand.u32 %s26, 1
        %s293 = scalar_lea.sflag [#allocation6], %s292
        %s294 = sand.u32 %s60, 1
        %s295 = smul.addr %s294, 16
        %s296 = scalar_lea.vmem [#allocation5], %s295
        %p297 = pneg %p73
        %p298 = pneg %p70
        %p299 = pneg %p94
        %p300 = pneg %p91
        %p301 = pneg %p115
        %p302 = pneg %p112
        %p303 = pneg %p136
        %p304 = pneg %p133
        %p305 = pneg %p162
        %p306 = pneg %p159
        %s307 = sand.u32 %s149, 1
        %s308 = scalar_lea.sflag [#allocation4], %s307
        %s309 = sand.u32 %s149, 1
        %s310 = smul.addr %s309, 32
        %s311 = scalar_lea.vmem [#allocation10], %s310
        %s312 = smul.u32 4, %s26
        %s313 = smul.u32 4, %s26
        %s314 = smul.u32 4, %s26
        %v316 = vld [vmem:[%s263] sm:$0xf]
        %v317 = vld [vmem:[%s263 + $0x4] sm:$0xf]
        %v318 = vld [vmem:[%s263 + $0x8] sm:$0xf]
        %v319 = vld [vmem:[%s263 + $0xc] sm:$0xf]
        %v320 = vld [vmem:[#allocation7] sm:$0xf]
        %v321 = vld [vmem:[#allocation7 + $0x4] sm:$0xf]
        %v322 = vld [vmem:[#allocation7 + $0x8] sm:$0xf]
        %v323 = vld [vmem:[#allocation7 + $0xc] sm:$0xf]
        %v324 = vld [vmem:[#allocation7 + $0x10] sm:$0xf]
        %v325 = vld [vmem:[#allocation7 + $0x14] sm:$0xf]
        %v326 = vld [vmem:[#allocation7 + $0x18] sm:$0xf]
        %v327 = vld [vmem:[#allocation7 + $0x1c] sm:$0xf]
        %v332 = vunpack.c.l.b16 %v316
        %v333 = vunpack.c.l.b16 %v317
        %v334 = vunpack.c.l.b16 %v318
        %v335 = vunpack.c.l.b16 %v319
        %v336 = vpack.c.b16 %v333, %v332
        %v337 = vpack.c.b16 %v335, %v334
        %v346 = vunpack.c.l.b16 %v320
        %v347 = vunpack.c.l.b16 %v321
        %v348 = vunpack.c.l.b16 %v322
        %v349 = vunpack.c.l.b16 %v323
        %v350 = vunpack.c.l.b16 %v324
        %v351 = vunpack.c.l.b16 %v325
        %v352 = vunpack.c.l.b16 %v326
        %v353 = vunpack.c.l.b16 %v327
        %v354 = vpack.c.b16 %v347, %v346
        %v355 = vpack.c.b16 %v349, %v348
        %v356 = vpack.c.b16 %v351, %v350
        %v357 = vpack.c.b16 %v353, %v352
        %vm362 = vcmask 523264
        %v364 = vsel %vm362, %v336, 0
        %v367 = vsel %vm362, %v337, 0
        %369 = vmatprep.subr.bf16.mxu0 0
        %370 = vmatpush1.bf16.msra.mxu0 %v354
        %371 = vmatprep.subr.bf16.mxu0 0
        %372 = vmatpush1.bf16.msra.mxu0 %v355
        %373 = vmatprep.subr.bf16.mxu0 0
        %374 = vmatpush1.bf16.msra.mxu0 %v356
        %375 = vmatprep.subr.bf16.mxu0 0
        %376 = vmatpush1.bf16.msra.mxu0 %v357
        %377 = vmatprep.subr.bf16.mxu0 0
        %378 = vmatpush1.bf16.msra.mxu0 0
        %379 = vmatprep.subr.bf16.mxu0 0
        %380 = vmatpush1.bf16.msra.mxu0 0
        %381 = vmatprep.subr.bf16.mxu0 0
        %382 = vmatpush1.bf16.msra.mxu0 0
        %383 = vmatprep.subr.bf16.mxu0 0
        %384 = vmatpush1.bf16.msra.mxu0 0
        %385 = vmatprep.subr.bf16.mxu0 0
        %386 = vmatpush1.bf16.msra.mxu0 0
        %387 = vmatprep.subr.bf16.mxu0 0
        %388 = vmatpush1.bf16.msra.mxu0 0
        %389 = vmatprep.subr.bf16.mxu0 0
        %390 = vmatpush1.bf16.msra.mxu0 0
        %391 = vmatprep.subr.bf16.mxu0 0
        %392 = vmatpush1.bf16.msra.mxu0 0
        %393 = vmatprep.subr.bf16.mxu0 0
        %394 = vmatpush1.bf16.msra.mxu0 0
        %395 = vmatprep.subr.bf16.mxu0 0
        %396 = vmatpush1.bf16.msra.mxu0 0
        %397 = vmatprep.subr.bf16.mxu0 0
        %398 = vmatpush1.bf16.msra.mxu0 0
        %399 = vmatprep.subr.bf16.mxu0 0
        %400 = vmatpush1.bf16.msra.mxu0 0
        %401 = vmatprep.mubr.bf16.mxu0 0
        %402 = vmatmul.mubr.bf16.gmra.mrb[0].mxu0 %v364
        %v403 = vpop.f32.mrb[0].mxu0
        %v404 = vadd.f32 0.0, %v403
        %v405 = vpop.f32.mrb[0].mxu0
        %v406 = vpop.f32.mrb[0].mxu0
        %v407 = vadd.f32 0.0, %v406
        %v408 = vpop.f32.mrb[0].mxu0
        %409 = vmatprep.mubr.bf16.mxu0 0
        %410 = vmatmul.mubr.bf16.gmra.mrb[0].mxu0 %v367
        %v411 = vpop.f32.mrb[0].mxu0
        %v412 = vadd.f32 0.0, %v411
        %v413 = vpop.f32.mrb[0].mxu0
        %v414 = vpop.f32.mrb[0].mxu0
        %v415 = vadd.f32 0.0, %v414
        %v416 = vpop.f32.mrb[0].mxu0
        %417 = vdwg.mxu0
        %v418 = vpack.c.bf16 %v407, %v404
        %v419 = vpack.c.bf16 %v415, %v412
        %v420 = vld [vmem:[%s272] sm:$0xf]
        %v421 = vld [vmem:[%s272 + $0x4] sm:$0xf]
        %v422 = vld [vmem:[%s272 + $0x8] sm:$0xf]
        %v423 = vld [vmem:[%s272 + $0xc] sm:$0xf]
        %v424 = vunpack.c.l.bf16 %v420
        %v425 = vunpack.c.l.bf16 %v421
        %v426 = vunpack.c.l.bf16 %v422
        %v427 = vunpack.c.l.bf16 %v423
        %v432 = vunpack.c.l.b16 %v420
        %v433 = vunpack.c.l.b16 %v421
        %v434 = vunpack.c.l.b16 %v422
        %v435 = vunpack.c.l.b16 %v423
        %v436 = vpack.c.b16 %v433, %v432
        %v437 = vpack.c.b16 %v435, %v434
        %v440 = vld [vmem:[#allocation8] sm:$0xf]
        %v441 = vld [vmem:[#allocation8 + $0x4] sm:$0xf]
        %v442 = vld [vmem:[#allocation8 + $0x8] sm:$0xf]
        %v443 = vld [vmem:[#allocation8 + $0xc] sm:$0xf]
        %v444 = vld [vmem:[#allocation8 + $0x10] sm:$0xf]
        %v445 = vld [vmem:[#allocation8 + $0x14] sm:$0xf]
        %v446 = vld [vmem:[#allocation8 + $0x18] sm:$0xf]
        %v447 = vld [vmem:[#allocation8 + $0x1c] sm:$0xf]
        %v448 = vld [vmem:[#allocation8 + $0x20] sm:$0xf]
        %v449 = vld [vmem:[#allocation8 + $0x24] sm:$0xf]
        %v450 = vld [vmem:[#allocation8 + $0x28] sm:$0xf]
        %v451 = vld [vmem:[#allocation8 + $0x2c] sm:$0xf]
        %v452 = vld [vmem:[#allocation8 + $0x30] sm:$0xf]
        %v453 = vld [vmem:[#allocation8 + $0x34] sm:$0xf]
        %v454 = vld [vmem:[#allocation8 + $0x38] sm:$0xf]
        %v455 = vld [vmem:[#allocation8 + $0x3c] sm:$0xf]
        %v456 = vld [vmem:[#allocation8 + $0x40] sm:$0xf]
        %v457 = vld [vmem:[#allocation8 + $0x44] sm:$0xf]
        %v458 = vld [vmem:[#allocation8 + $0x48] sm:$0xf]
        %v459 = vld [vmem:[#allocation8 + $0x4c] sm:$0xf]
        %v460 = vld [vmem:[#allocation8 + $0x50] sm:$0xf]
        %v461 = vld [vmem:[#allocation8 + $0x54] sm:$0xf]
        %v462 = vld [vmem:[#allocation8 + $0x58] sm:$0xf]
        %v463 = vld [vmem:[#allocation8 + $0x5c] sm:$0xf]
        %v464 = vld [vmem:[#allocation8 + $0x60] sm:$0xf]
        %v465 = vld [vmem:[#allocation8 + $0x64] sm:$0xf]
        %v466 = vld [vmem:[#allocation8 + $0x68] sm:$0xf]
        %v467 = vld [vmem:[#allocation8 + $0x6c] sm:$0xf]
        %v468 = vld [vmem:[#allocation8 + $0x70] sm:$0xf]
        %v469 = vld [vmem:[#allocation8 + $0x74] sm:$0xf]
        %v470 = vld [vmem:[#allocation8 + $0x78] sm:$0xf]
        %v471 = vld [vmem:[#allocation8 + $0x7c] sm:$0xf]
        %v472 = vld [vmem:[%s4] sm:$0x1]
        %v474 = vlaneseq
        %v475 = vshrl.u32 %v474, 7
        %v476 = vsub.s32 0, %v475
        %v477 = vrot.slane %v472, %v476
        %v511 = vunpack.c.l.b16 %v440
        %v512 = vunpack.c.l.b16 %v441
        %v513 = vunpack.c.l.b16 %v442
        %v514 = vunpack.c.l.b16 %v443
        %v515 = vunpack.c.l.b16 %v444
        %v516 = vunpack.c.l.b16 %v445
        %v517 = vunpack.c.l.b16 %v446
        %v518 = vunpack.c.l.b16 %v447
        %v519 = vunpack.c.l.b16 %v448
        %v520 = vunpack.c.l.b16 %v449
        %v521 = vunpack.c.l.b16 %v450
        %v522 = vunpack.c.l.b16 %v451
        %v523 = vunpack.c.l.b16 %v452
        %v524 = vunpack.c.l.b16 %v453
        %v525 = vunpack.c.l.b16 %v454
        %v526 = vunpack.c.l.b16 %v455
        %v527 = vunpack.c.l.b16 %v456
        %v528 = vunpack.c.l.b16 %v457
        %v529 = vunpack.c.l.b16 %v458
        %v530 = vunpack.c.l.b16 %v459
        %v531 = vunpack.c.l.b16 %v460
        %v532 = vunpack.c.l.b16 %v461
        %v533 = vunpack.c.l.b16 %v462
        %v534 = vunpack.c.l.b16 %v463
        %v535 = vunpack.c.l.b16 %v464
        %v536 = vunpack.c.l.b16 %v465
        %v537 = vunpack.c.l.b16 %v466
        %v538 = vunpack.c.l.b16 %v467
        %v539 = vunpack.c.l.b16 %v468
        %v540 = vunpack.c.l.b16 %v469
        %v541 = vunpack.c.l.b16 %v470
        %v542 = vunpack.c.l.b16 %v471
        %v543 = vpack.c.b16 %v512, %v511
        %v544 = vpack.c.b16 %v514, %v513
        %v545 = vpack.c.b16 %v516, %v515
        %v546 = vpack.c.b16 %v518, %v517
        %v547 = vpack.c.b16 %v520, %v519
        %v548 = vpack.c.b16 %v522, %v521
        %v549 = vpack.c.b16 %v524, %v523
        %v550 = vpack.c.b16 %v526, %v525
        %v551 = vpack.c.b16 %v528, %v527
        %v552 = vpack.c.b16 %v530, %v529
        %v553 = vpack.c.b16 %v532, %v531
        %v554 = vpack.c.b16 %v534, %v533
        %v555 = vpack.c.b16 %v536, %v535
        %v556 = vpack.c.b16 %v538, %v537
        %v557 = vpack.c.b16 %v540, %v539
        %v558 = vpack.c.b16 %v542, %v541
        %575 = vmatprep.subr.bf16.mxu0 0
        %576 = vmatpush1.bf16.msra.mxu0 %v543
        %577 = vmatprep.subr.bf16.mxu0 0
        %578 = vmatpush1.bf16.msra.mxu0 %v544
        %579 = vmatprep.subr.bf16.mxu0 0
        %580 = vmatpush1.bf16.msra.mxu0 %v545
        %581 = vmatprep.subr.bf16.mxu0 0
        %582 = vmatpush1.bf16.msra.mxu0 %v546
        %583 = vmatprep.subr.bf16.mxu0 0
        %584 = vmatpush1.bf16.msra.mxu0 %v547
        %585 = vmatprep.subr.bf16.mxu0 0
        %586 = vmatpush1.bf16.msra.mxu0 %v548
        %587 = vmatprep.subr.bf16.mxu0 0
        %588 = vmatpush1.bf16.msra.mxu0 %v549
        %589 = vmatprep.subr.bf16.mxu0 0
        %590 = vmatpush1.bf16.msra.mxu0 %v550
        %591 = vmatprep.subr.bf16.mxu0 0
        %592 = vmatpush1.bf16.msra.mxu0 %v551
        %593 = vmatprep.subr.bf16.mxu0 0
        %594 = vmatpush1.bf16.msra.mxu0 %v552
        %595 = vmatprep.subr.bf16.mxu0 0
        %596 = vmatpush1.bf16.msra.mxu0 %v553
        %597 = vmatprep.subr.bf16.mxu0 0
        %598 = vmatpush1.bf16.msra.mxu0 %v554
        %599 = vmatprep.subr.bf16.mxu0 0
        %600 = vmatpush1.bf16.msra.mxu0 %v555
        %601 = vmatprep.subr.bf16.mxu0 0
        %602 = vmatpush1.bf16.msra.mxu0 %v556
        %603 = vmatprep.subr.bf16.mxu0 0
        %604 = vmatpush1.bf16.msra.mxu0 %v557
        %605 = vmatprep.subr.bf16.mxu0 0
        %606 = vmatpush1.bf16.msra.mxu0 %v558
        %607 = vmatprep.mubr.bf16.mxu0 %v436
        %608 = vmatmul.mubr.bf16.gmra.mrb[0].mxu0 %v418
        %v609 = vpop.f32.mrb[0].mxu0
        %v610 = vadd.f32 %v477, %v609
        %v611 = vpop.f32.mrb[0].mxu0
        %v612 = vpop.f32.mrb[0].mxu0
        %v613 = vadd.f32 %v477, %v612
        %v614 = vpop.f32.mrb[0].mxu0
        %615 = vmatprep.mubr.bf16.mxu0 %v437
        %616 = vmatmul.mubr.bf16.gmra.mrb[0].mxu0 %v419
        %v617 = vpop.f32.mrb[0].mxu0
        %v618 = vadd.f32 %v477, %v617
        %v619 = vpop.f32.mrb[0].mxu0
        %v620 = vpop.f32.mrb[0].mxu0
        %v621 = vadd.f32 %v477, %v620
        %v622 = vpop.f32.mrb[0].mxu0
        %623 = vdwg.mxu0
        %v624 = vxor.u32 %v610, 2147483648
        %v625 = vxor.u32 %v613, 2147483648
        %v626 = vxor.u32 %v618, 2147483648
        %v627 = vxor.u32 %v621, 2147483648
        %v628 = vmul.f32 %v624, 1.442695
        %v629 = vpow.pop %v628
        %v630 = vmul.f32 %v625, 1.442695
        %v631 = vpow.pop %v630
        %v632 = vmul.f32 %v626, 1.442695
        %v633 = vpow.pop %v632
        %v634 = vmul.f32 %v627, 1.442695
        %v635 = vpow.pop %v634
        %v636 = vadd.f32 %v629, 1.0
        %v637 = vadd.f32 %v631, 1.0
        %v638 = vadd.f32 %v633, 1.0
        %v639 = vadd.f32 %v635, 1.0
        %v640 = vrcp.pop %v636
        %v641 = vmul.f32 1.0, %v640
        %v642 = vrcp.pop %v637
        %v643 = vmul.f32 1.0, %v642
        %v644 = vrcp.pop %v638
        %v645 = vmul.f32 1.0, %v644
        %v646 = vrcp.pop %v639
        %v647 = vmul.f32 1.0, %v646
        %v648 = vmul.f32 %v641, %v424
        %v649 = vmul.f32 %v643, %v425
        %v650 = vmul.f32 %v645, %v426
        %v651 = vmul.f32 %v647, %v427
        %v652 = vsub.f32 1.0, %v641
        %v653 = vsub.f32 1.0, %v643
        %v654 = vsub.f32 1.0, %v645
        %v655 = vsub.f32 1.0, %v647
        %v656 = vmul.f32 %v652, %v404
        %v657 = vmul.f32 %v653, %v407
        %v658 = vmul.f32 %v654, %v412
        %v659 = vmul.f32 %v655, %v415
        %v660 = vadd.f32 %v648, %v656
        %v661 = vadd.f32 %v649, %v657
        %v662 = vadd.f32 %v650, %v658
        %v663 = vadd.f32 %v651, %v659
        %664 = vst [vmem:[%s311] sm:$0xff] %v660
        %665 = vst [vmem:[%s311 + $0x8] sm:$0xff] %v661
        %666 = vst [vmem:[%s311 + $0x10] sm:$0xff] %v662
        %667 = vst [vmem:[%s311 + $0x18] sm:$0xff] %v663
        %s668 = sand.u32 %s149, 1
        %s669 = scalar_lea.sflag [#allocation4], %s668
        %s670 = sand.u32 %s149, 1
        %s671 = smul.addr %s670, 32
        %s672 = scalar_lea.vmem [#allocation10], %s671
        // Predicated region
        $region57: #{tpu_custom_call.1} parent=39 // pred_check
          %p673 = pneg %p159
        $region58: #{tpu_custom_call.1} parent=39 // pred_check_branch
          %675 = sbr.rel (%p673) target = $region60
        $region59: #{tpu_custom_call.1} parent=39 // pred_region
          %s676 = smul.u32 4, %s26
          %s678 = ssub.s32 512, 512
          %679 = vsyncadd %s669, %s678
          %s680 = smul.addr %s676, 128
          %s681 = scalar_lea.hbm %s5, %s680
          %s682 = sshll.u32 %s672, 4
          %s683 = int_to_ptr.vmem [resolvable:$true] %s682
          %688 = dma.vmem_to_hbm [thread:$0]  %s683, 512, %s681, %s669, 128, 128, 8
        $region60: #{tpu_custom_call.1} parent=39 // pred_fallthru
          _
      $region40: #{tpu_custom_call.1} parent=5 // pred_fallthru
        _
      %p689 = scmp.le.s32.totalorder 2, %s21
      // Predicated region
      $region61: #{tpu_custom_call.1} parent=5 // pred_check
        %p690 = pneg %p689
      $region62: #{tpu_custom_call.1} parent=5 // pred_check_branch
        %692 = sbr.rel (%p690) target = $region64
      $region63: #{tpu_custom_call.1} parent=5 // pred_region
        %s693 = ssub.s32 %s21, 2
        // Predicated region
        $region65: #{tpu_custom_call.1} parent=63 // pred_check
          %p694 = pneg %p165
        $region66: #{tpu_custom_call.1} parent=63 // pred_check_branch
          %696 = sbr.rel (%p694) target = $region68
        $region67: #{tpu_custom_call.1} parent=63 // pred_region
          %s697 = sand.u32 %s150, 1
          %s698 = scalar_lea.sflag [#allocation4], %s697
          %s699 = sand.u32 %s150, 1
          %s700 = smul.addr %s699, 32
          %s701 = scalar_lea.vmem [#allocation10], %s700
          %702 = dma.done %s698, 512
        $region68: #{tpu_custom_call.1} parent=63 // pred_fallthru
          _
      $region64: #{tpu_custom_call.1} parent=5 // pred_fallthru
        _
    $region6: #{tpu_custom_call.1} parent=1 // loop_footer
      %s25 = sadd.s32 1, %s21
    $region7: #{tpu_custom_call.1} parent=1 // loop_footer_branch
      %20 = sbr.rel target = $region3
    $region8: #{tpu_custom_call.1} parent=1 // loop_exit
      _
    %703 = vsyncpa [#allocation3], 1
    %s704 = scalar_lea.sflag [#allocation3], 1
    %705 = vsyncpa %s704, 1
    %706 = vsyncpa [#allocation6], 1
    %s707 = scalar_lea.sflag [#allocation6], 1
    %708 = vsyncpa %s707, 1
    %709 = vsyncpa [#allocation9], 1
    %710 = vsyncpa [#allocation4], 1
    %s711 = scalar_lea.sflag [#allocation4], 1
    %712 = vsyncpa %s711, 1

</llo_original>
